<compile_context>
chip_gen: v7x
topology: tpu7x:2x2x1
jax: 0.10.0
libtpu: 0.0.40
codegen_flags: <defaults>
</compile_context>

<pallas_src>
import functools

import jax
import jax.numpy as jnp
from jax import lax
from jax.experimental import pallas as pl
from jax.experimental.pallas import tpu as pltpu


_NEG_FILL = -1e30                       # finite "-inf": keeps fully-masked rows NaN-free
_VMEM_BUDGET_BYTES = 40 * 1024 * 1024   # target for the double-buffered working set
_VMEM_LIMIT_BYTES = 48 * 1024 * 1024    # scoped VMEM limit (safe on v7x's 64 MiB)


def _pick_tq(n_q, n_k, d_k, d_v, in_bytes, mask_bytes, attn_bytes, out_bytes):
    """Largest q-tile (<=256, multiple of 8, divides n_q) whose double-buffered
    working set fits the VMEM budget. Capped at 256 so the q axis keeps >1 tiles
    (megacore sharding) for realistic sequence lengths."""
    for tq in (256, 128, 64, 32, 16, 8):
        if n_q % tq:
            continue
        per_step = (tq * d_k * in_bytes        # q tile
                    + n_k * d_k * in_bytes     # k (full keys per q-tile)
                    + n_k * d_v * in_bytes     # v (full keys per q-tile)
                    + tq * n_k * mask_bytes    # mask tile (int8)
                    + tq * n_k * attn_bytes    # attn output tile
                    + tq * d_v * out_bytes)    # out output tile
        if 2 * per_step <= _VMEM_BUDGET_BYTES:
            return tq
    return n_q  # full-n_q block is always a legal block shape


def _sdpa_kernel(*refs, inv_scale, has_mask):
    if has_mask:
        q_ref, k_ref, v_ref, mask_ref, attn_ref, out_ref = refs
    else:
        q_ref, k_ref, v_ref, attn_ref, out_ref = refs

    q = q_ref[0]          # (TQ, d_k)
    k = k_ref[0]          # (n_k, d_k)
    v = v_ref[0]          # (n_k, d_v)

    # scores = q @ k^T, contracting the feature dim directly (no K transpose),
    # f32 accumulation on the MXU regardless of input dtype.
    s = lax.dot_general(
        q, k,
        dimension_numbers=(((1,), (1,)), ((), ())),
        preferred_element_type=jnp.float32,
    )
    s = s * inv_scale

    if has_mask:
        # nonzero == masked; finite sentinel so fully-masked rows stay finite
        # (they yield a uniform row instead of torch's NaNs).
        s = jnp.where(mask_ref[0] != 0, _NEG_FILL, s)

    # Numerically-stable softmax over the key axis, f32 throughout.
    m = jnp.max(s, axis=-1, keepdims=True)
    e = jnp.exp(s - m)
    denom = jnp.sum(e, axis=-1, keepdims=True)
    recip = pl.reciprocal(denom)          # reciprocal on (TQ,1), not a (TQ,n_k) divide
    attn = e * recip

    attn_ref[0] = attn.astype(attn_ref.dtype)

    out = jnp.dot(attn.astype(v.dtype), v, preferred_element_type=jnp.float32)
    out_ref[0] = out.astype(out_ref.dtype)


def scaled_dot_product_attention(q, k, v, mask=None, scale=1.0):
    """Returns (attn, output) matching the PyTorch module's forward."""
    B, n_q, d_k = q.shape
    _, n_k, d_kk = k.shape
    _, n_kv, d_v = v.shape
    assert d_k == d_kk and n_k == n_kv and k.shape[0] == B and v.shape[0] == B

    attn_dtype = q.dtype
    out_dtype = q.dtype
    in_bytes = jnp.dtype(q.dtype).itemsize
    mask_bytes = 1 if mask is not None else 0
    tq = _pick_tq(n_q, n_k, d_k, d_v, in_bytes, mask_bytes,
                  jnp.dtype(attn_dtype).itemsize, jnp.dtype(out_dtype).itemsize)

    grid = (B, n_q // tq)

    in_specs = [
        pl.BlockSpec((1, tq, d_k), lambda b, qi: (b, qi, 0)),
        pl.BlockSpec((1, n_k, d_k), lambda b, qi: (b, 0, 0)),
        pl.BlockSpec((1, n_k, d_v), lambda b, qi: (b, 0, 0)),
    ]
    operands = [q, k, v]

    has_mask = mask is not None
    if has_mask:
        mask_i8 = mask.astype(jnp.int8)
        if mask_i8.ndim == 2:
            mask_i8 = mask_i8[None]
        if mask_i8.shape[0] == 1:
            # Batch-invariant mask: index_map ignores b (no B-fold HBM traffic).
            in_specs.append(pl.BlockSpec((1, tq, n_k), lambda b, qi: (0, qi, 0)))
        else:
            in_specs.append(pl.BlockSpec((1, tq, n_k), lambda b, qi: (b, qi, 0)))
        operands.append(mask_i8)

    out_specs = (
        pl.BlockSpec((1, tq, n_k), lambda b, qi: (b, qi, 0)),
        pl.BlockSpec((1, tq, d_v), lambda b, qi: (b, qi, 0)),
    )
    out_shape = (
        jax.ShapeDtypeStruct((B, n_q, n_k), attn_dtype),
        jax.ShapeDtypeStruct((B, n_q, d_v), out_dtype),
    )

    kernel = functools.partial(
        _sdpa_kernel, inv_scale=float(1.0 / scale), has_mask=has_mask)

    attn, out = pl.pallas_call(
        kernel,
        out_shape=out_shape,
        grid=grid,
        in_specs=in_specs,
        out_specs=out_specs,
        compiler_params=pltpu.CompilerParams(
            dimension_semantics=("parallel", "parallel"),
            vmem_limit_bytes=_VMEM_LIMIT_BYTES,
        ),
    )(*operands)
    return attn, out


def _reference(q, k, v, mask, scale):
    u = jnp.einsum("bqd,bkd->bqk", q, k) / scale
    if mask is not None:
        u = jnp.where(mask, -jnp.inf, u)
    attn = jax.nn.softmax(u, axis=-1)
    out = jnp.einsum("bqk,bkd->bqd", attn, v)
    return attn, out


if __name__ == "__main__":
    key = jax.random.PRNGKey(0)
    kq, kk, kv = jax.random.split(key, 3)

    B, n_q, n_k, d_k, d_v = 2, 256, 128, 64, 64
    scale = float(d_k) ** 0.5

    q = jax.random.normal(kq, (B, n_q, d_k), dtype=jnp.float32)
    k = jax.random.normal(kk, (B, n_k, d_k), dtype=jnp.float32)
    v = jax.random.normal(kv, (B, n_k, d_v), dtype=jnp.float32)

    # Causal-style mask (True == masked), shared across the batch (passed 2-D so
    # the kernel deduplicates it), with no fully-masked rows.
    mask = jnp.triu(jnp.ones((n_q, n_k), dtype=jnp.bool_), k=1)

    attn_ref, out_ref = _reference(q, k, v, mask, scale)

    # f32 path with mask: tight check against the pure-JAX reference.
    attn, out = scaled_dot_product_attention(q, k, v, mask, scale)
    jax.block_until_ready((attn, out))
    assert jnp.allclose(attn, attn_ref, atol=1e-4, rtol=1e-4)
    assert jnp.allclose(out, out_ref, atol=1e-4, rtol=1e-4)

    # f32 path without mask.
    attn_nm_ref, out_nm_ref = _reference(q, k, v, None, scale)
    attn_nm, out_nm = scaled_dot_product_attention(q, k, v, None, scale)
    jax.block_until_ready((attn_nm, out_nm))
    assert jnp.allclose(attn_nm, attn_nm_ref, atol=1e-4, rtol=1e-4)
    assert jnp.allclose(out_nm, out_nm_ref, atol=1e-4, rtol=1e-4)

    # bf16 path: MXU-friendly inputs, f32 accumulation inside the kernel.
    attn16, out16 = scaled_dot_product_attention(
        q.astype(jnp.bfloat16), k.astype(jnp.bfloat16), v.astype(jnp.bfloat16),
        mask, scale)
    jax.block_until_ready((attn16, out16))
    assert jnp.allclose(attn16.astype(jnp.float32), attn_ref, atol=5e-2, rtol=5e-2)
    assert jnp.allclose(out16.astype(jnp.float32), out_ref, atol=5e-2, rtol=5e-2)

    print("KERNEL_OK")
</pallas_src>

<mosaic_0001>
module attributes {stable_mosaic.version = 11 : i64} {
  func.func @_sdpa_kernel(%arg0: i32, %arg1: i32, %arg2: memref<1x256x64xf32, #tpu.memory_space<vmem>>, %arg3: memref<1x128x64xf32, #tpu.memory_space<vmem>>, %arg4: memref<1x128x64xf32, #tpu.memory_space<vmem>>, %arg5: memref<1x256x128xi8, #tpu.memory_space<vmem>>, %arg6: memref<1x256x128xf32, #tpu.memory_space<vmem>>, %arg7: memref<1x256x64xf32, #tpu.memory_space<vmem>>) attributes {dimension_semantics = [#tpu.dimension_semantics<parallel>, #tpu.dimension_semantics<parallel>], iteration_bounds = array<i64: 2, 1>, scalar_prefetch = 0 : i64, scratch_operands = 0 : i64, tpu.core_type = #tpu.core_type<tc>, window_params = [{transform_indices = @transform_0, window_bounds = array<i64: 1, 256, 64>}, {transform_indices = @transform_1, window_bounds = array<i64: 1, 128, 64>}, {transform_indices = @transform_2, window_bounds = array<i64: 1, 128, 64>}, {transform_indices = @transform_3, window_bounds = array<i64: 1, 256, 128>}, {transform_indices = @transform_4, window_bounds = array<i64: 1, 256, 128>}, {transform_indices = @transform_5, window_bounds = array<i64: 1, 256, 64>}]} {
    %c0 = arith.constant 0 : index
    %c0_0 = arith.constant 0 : index
    %c0_1 = arith.constant 0 : index
    %0 = vector.load %arg2[%c0, %c0_0, %c0_1] : memref<1x256x64xf32, #tpu.memory_space<vmem>>, vector<1x256x64xf32>
    %1 = vector.shape_cast %0 : vector<1x256x64xf32> to vector<256x64xf32>
    %c0_2 = arith.constant 0 : index
    %c0_3 = arith.constant 0 : index
    %c0_4 = arith.constant 0 : index
    %2 = vector.load %arg3[%c0_2, %c0_3, %c0_4] : memref<1x128x64xf32, #tpu.memory_space<vmem>>, vector<1x128x64xf32>
    %3 = vector.shape_cast %2 : vector<1x128x64xf32> to vector<128x64xf32>
    %c0_5 = arith.constant 0 : index
    %c0_6 = arith.constant 0 : index
    %c0_7 = arith.constant 0 : index
    %4 = vector.load %arg4[%c0_5, %c0_6, %c0_7] : memref<1x128x64xf32, #tpu.memory_space<vmem>>, vector<1x128x64xf32>
    %5 = vector.shape_cast %4 : vector<1x128x64xf32> to vector<128x64xf32>
    %cst = arith.constant dense<0.000000e+00> : vector<256x128xf32>
    %6 = tpu.matmul %1, %3, %cst {dimension_numbers = #tpu.dot_dimension_numbers<[1], [1], [0], [0], [0, 0, 1, 0], [], []>} : vector<256x64xf32>, vector<128x64xf32>, vector<256x128xf32> -> vector<256x128xf32>
    %cst_8 = arith.constant 1.250000e-01 : f32
    %7 = vector.broadcast %cst_8 : f32 to vector<256x128xf32>
    %8 = arith.mulf %6, %7 : vector<256x128xf32>
    %c0_9 = arith.constant 0 : index
    %c0_10 = arith.constant 0 : index
    %c0_11 = arith.constant 0 : index
    %9 = vector.load %arg5[%c0_9, %c0_10, %c0_11] : memref<1x256x128xi8, #tpu.memory_space<vmem>>, vector<1x256x128xi8>
    %10 = vector.shape_cast %9 : vector<1x256x128xi8> to vector<256x128xi8>
    %c0_i8 = arith.constant 0 : i8
    %11 = vector.broadcast %c0_i8 : i8 to vector<256x128xi8>
    %12 = arith.cmpi ne, %10, %11 : vector<256x128xi8>
    %cst_12 = arith.constant -1.000000e+30 : f32
    %13 = vector.broadcast %cst_12 : f32 to vector<256x128xf32>
    %14 = arith.select %12, %13, %8 : vector<256x128xi1>, vector<256x128xf32>
    %cst_13 = arith.constant dense<0xFF800000> : vector<256xf32>
    %15 = vector.multi_reduction <maximumf>, %14, %cst_13 [1] : vector<256x128xf32> to vector<256xf32>
    %16 = vector.shape_cast %15 : vector<256xf32> to vector<256x1xf32>
    %17 = vector.broadcast %16 : vector<256x1xf32> to vector<256x128xf32>
    %18 = arith.subf %14, %17 : vector<256x128xf32>
    %19 = math.exp %18 : vector<256x128xf32>
    %cst_14 = arith.constant dense<0.000000e+00> : vector<256xf32>
    %20 = vector.multi_reduction <add>, %19, %cst_14 [1] : vector<256x128xf32> to vector<256xf32>
    %21 = vector.shape_cast %20 : vector<256xf32> to vector<256x1xf32>
    %22 = tpu.reciprocal %21 : vector<256x1xf32> -> vector<256x1xf32>
    %23 = vector.broadcast %22 : vector<256x1xf32> to vector<256x128xf32>
    %24 = arith.mulf %19, %23 : vector<256x128xf32>
    %c0_15 = arith.constant 0 : index
    %c0_16 = arith.constant 0 : index
    %c0_17 = arith.constant 0 : index
    %25 = vector.load %arg6[%c0_15, %c0_16, %c0_17] : memref<1x256x128xf32, #tpu.memory_space<vmem>>, vector<1x256x128xf32>
    %26 = vector.shape_cast %25 : vector<1x256x128xf32> to vector<256x128xf32>
    %27 = vector.shape_cast %24 : vector<256x128xf32> to vector<1x256x128xf32>
    tpu.vector_store %arg6[%c0_15, %c0_16, %c0_17], %27 {strides = array<i32>} : memref<1x256x128xf32, #tpu.memory_space<vmem>>, vector<1x256x128xf32>,
    %cst_18 = arith.constant dense<0.000000e+00> : vector<256x64xf32>
    %28 = tpu.matmul %24, %5, %cst_18 {dimension_numbers = #tpu.dot_dimension_numbers<[1], [0], [0], [1], [0, 0, 1, 1], [], []>} : vector<256x128xf32>, vector<128x64xf32>, vector<256x64xf32> -> vector<256x64xf32>
    %c0_19 = arith.constant 0 : index
    %c0_20 = arith.constant 0 : index
    %c0_21 = arith.constant 0 : index
    %29 = vector.load %arg7[%c0_19, %c0_20, %c0_21] : memref<1x256x64xf32, #tpu.memory_space<vmem>>, vector<1x256x64xf32>
    %30 = vector.shape_cast %29 : vector<1x256x64xf32> to vector<256x64xf32>
    %31 = vector.shape_cast %28 : vector<256x64xf32> to vector<1x256x64xf32>
    tpu.vector_store %arg7[%c0_19, %c0_20, %c0_21], %31 {strides = array<i32>} : memref<1x256x64xf32, #tpu.memory_space<vmem>>, vector<1x256x64xf32>,
    return
  }
  func.func @transform_0(%arg0: i32, %arg1: i32) -> (i32, i32, i32) {
    %c0_i32 = arith.constant 0 : i32
    %c0_i32_0 = arith.constant 0 : i32
    return %arg0, %arg1, %c0_i32 : i32, i32, i32
  }
  func.func @transform_1(%arg0: i32, %arg1: i32) -> (i32, i32, i32) {
    %c0_i32 = arith.constant 0 : i32
    %c0_i32_0 = arith.constant 0 : i32
    %c0_i32_1 = arith.constant 0 : i32
    return %arg0, %c0_i32, %c0_i32_0 : i32, i32, i32
  }
  func.func @transform_2(%arg0: i32, %arg1: i32) -> (i32, i32, i32) {
    %c0_i32 = arith.constant 0 : i32
    %c0_i32_0 = arith.constant 0 : i32
    %c0_i32_1 = arith.constant 0 : i32
    return %arg0, %c0_i32, %c0_i32_0 : i32, i32, i32
  }
  func.func @transform_3(%arg0: i32, %arg1: i32) -> (i32, i32, i32) {
    %c0_i32 = arith.constant 0 : i32
    %c0_i32_0 = arith.constant 0 : i32
    %c0_i32_1 = arith.constant 0 : i32
    return %c0_i32, %arg1, %c0_i32_0 : i32, i32, i32
  }
  func.func @transform_4(%arg0: i32, %arg1: i32) -> (i32, i32, i32) {
    %c0_i32 = arith.constant 0 : i32
    %c0_i32_0 = arith.constant 0 : i32
    return %arg0, %arg1, %c0_i32 : i32, i32, i32
  }
  func.func @transform_5(%arg0: i32, %arg1: i32) -> (i32, i32, i32) {
    %c0_i32 = arith.constant 0 : i32
    %c0_i32_0 = arith.constant 0 : i32
    return %arg0, %arg1, %c0_i32 : i32, i32, i32
  }
}

</mosaic_0001>

<llo_original>
// kernel: tpu_custom_call.1
$region0: #{tpu_custom_call.1}
  #allocation0 [shape = 'u32[]', space=smem, size = 0x4, offset = 0x4, fixed_abs, tag = 'smem constant byte address 0x4 - core index']
  #allocation1 [shape = 'u32[144,128]{1,0:T(1,128)}', space=vmem, size = 0x12000, scoped, tag = 'internal scratch']
  %s0 = inlined_call_operand.vmem [shape: f32[2,256,64], index: 0, kind: input, shape index: {}]
  %s1 = inlined_call_operand.vmem [shape: f32[2,128,64], index: 1, kind: input, shape index: {}]
  %s2 = inlined_call_operand.vmem [shape: f32[2,128,64], index: 2, kind: input, shape index: {}]
  %s3 = inlined_call_operand.vmem [shape: s8[1,256,128], index: 3, kind: input, shape index: {}]
  %s4 = inlined_call_operand.hbm [shape: f32[2,256,128], index: 4, kind: output, shape index: {0}]
  %s5 = inlined_call_operand.vmem [shape: f32[2,256,64], index: 5, kind: output, shape index: {1}]
  %6 = xla_tuple %s4, %s5
  %s7 = sld [smem:[#allocation0]]
  $region57: #{tpu_custom_call.1} parent=0
    _
  %s9 = ssub.s32 1, %s7
  %s10 = scalar_select 0, %s9, %s7
  $region1: #{tpu_custom_call.1} parent=0
    #allocation2 [shape = 'u8[262144]{0}', space=vmem, size = 0x40000, scoped, tag = 'output window, operand 0']
    #allocation3 [shape = 's32[2]{0}', space=sflag, size = 0x8, scoped, tag = 'scoped memory for tpu_custom_call.1']
    %11 = vsyncpa [#allocation3], 0
    %s12 = scalar_lea.sflag [#allocation3], 1
    %13 = vsyncpa %s12, 0
    loop: start=0, step=1, limit=4
    $region2: #{tpu_custom_call.1} parent=1 // loop_pre_header
      _
    $region3: #{tpu_custom_call.1} parent=1 // loop_header
      %s15 = sphi 0, %s19
      %p16 = scmp.ge.s32.totalorder %s15, 4
      %s22 = sphi 0, %s34
      %s23 = sphi 0, %s30
      %s24 = sphi 0, %s22
      %s25 = sphi 0, %s23
      %s26 = sphi 0, %s24
      %s27 = sphi 0, %s25
      %s39 = sphi 0, %s41
      %s42 = sphi 0, %s39
      %s43 = sphi 0, %s42
      %s59 = sphi 0, %s43
      %s65 = sphi 0, %s67
      %s68 = sphi 0, %s65
      %s69 = sphi 0, %s68
      %s85 = sphi 0, %s69
      %s91 = sphi 0, %s93
      %s94 = sphi 0, %s91
      %s95 = sphi 0, %s94
      %s111 = sphi 0, %s95
      %s117 = sphi 0, %s119
      %s120 = sphi 0, %s117
      %s121 = sphi 0, %s120
      %s137 = sphi 0, %s121
      %s145 = sphi 0, %s147
      %s148 = sphi 0, %s145
      %s149 = sphi 0, %s148
      %s165 = sphi 0, %s149
      %s173 = sphi 0, %s175
      %s176 = sphi 0, %s173
      %s177 = sphi 0, %s176
      %s193 = sphi 0, %s177
    $region4: #{tpu_custom_call.1} parent=1 // loop_header_branch
      %18 = sbr.rel (%p16) target = $region8
    $region5: #{tpu_custom_call.1} parent=1 // loop_body
      %s20 = ssub.s32 %s15, 1
      %s21 = ssub.s32 %s15, 2
      %s28 = sadd.s32 1, %s23
      %p29 = scmp.ge.s32.totalorder %s28, 1
      %s30 = scalar_select %p29, 0, %s28
      %s31 = sadd.s32 1, %s22
      %s32 = scalar_select %p29, %s31, %s22
      %p33 = scmp.ge.s32.totalorder %s32, 2
      %s34 = scalar_select %p33, 0, %s32
      %s35 = ssub.s32 %s22, %s34
      %s36 = ssub.s32 %s23, %s30
      %s37 = sor.u32 %s35, %s36
      %p38 = scmp.eq.s32.totalorder %s37, 0
      %s40 = sadd.s32 %s39, 1
      %s41 = scalar_select %p38, %s39, %s40
      %p44 = pneg %p38
      %p45 = scmp.eq.s32.totalorder %s15, 1
      %p46 = por %p44, %p45
      %p47 = scmp.ne.s32.totalorder %s39, %s42
      %p48 = scmp.eq.s32.totalorder %s15, 0
      %p49 = por %p47, %p48
      %p50 = scmp.ne.s32.totalorder %s39, %s42
      %p51 = scmp.eq.s32.totalorder %s20, 1
      %p52 = por %p50, %p51
      %p53 = scmp.ne.s32.totalorder %s42, %s43
      %p54 = scmp.eq.s32.totalorder %s20, 0
      %p55 = por %p53, %p54
      %p56 = scmp.ne.s32.totalorder %s42, %s43
      %p57 = scmp.eq.s32.totalorder %s21, 1
      %p58 = por %p56, %p57
      %p60 = scmp.ne.s32.totalorder %s43, %s59
      %p61 = scmp.eq.s32.totalorder %s21, 0
      %p62 = por %p60, %p61
      %s63 = ssub.s32 %s22, %s34
      %p64 = scmp.eq.s32.totalorder %s63, 0
      %s66 = sadd.s32 %s65, 1
      %s67 = scalar_select %p64, %s65, %s66
      %p70 = pneg %p64
      %p71 = scmp.eq.s32.totalorder %s15, 1
      %p72 = por %p70, %p71
      %p73 = scmp.ne.s32.totalorder %s65, %s68
      %p74 = scmp.eq.s32.totalorder %s15, 0
      %p75 = por %p73, %p74
      %p76 = scmp.ne.s32.totalorder %s65, %s68
      %p77 = scmp.eq.s32.totalorder %s20, 1
      %p78 = por %p76, %p77
      %p79 = scmp.ne.s32.totalorder %s68, %s69
      %p80 = scmp.eq.s32.totalorder %s20, 0
      %p81 = por %p79, %p80
      %p82 = scmp.ne.s32.totalorder %s68, %s69
      %p83 = scmp.eq.s32.totalorder %s21, 1
      %p84 = por %p82, %p83
      %p86 = scmp.ne.s32.totalorder %s69, %s85
      %p87 = scmp.eq.s32.totalorder %s21, 0
      %p88 = por %p86, %p87
      %s89 = ssub.s32 %s22, %s34
      %p90 = scmp.eq.s32.totalorder %s89, 0
      %s92 = sadd.s32 %s91, 1
      %s93 = scalar_select %p90, %s91, %s92
      %p96 = pneg %p90
      %p97 = scmp.eq.s32.totalorder %s15, 1
      %p98 = por %p96, %p97
      %p99 = scmp.ne.s32.totalorder %s91, %s94
      %p100 = scmp.eq.s32.totalorder %s15, 0
      %p101 = por %p99, %p100
      %p102 = scmp.ne.s32.totalorder %s91, %s94
      %p103 = scmp.eq.s32.totalorder %s20, 1
      %p104 = por %p102, %p103
      %p105 = scmp.ne.s32.totalorder %s94, %s95
      %p106 = scmp.eq.s32.totalorder %s20, 0
      %p107 = por %p105, %p106
      %p108 = scmp.ne.s32.totalorder %s94, %s95
      %p109 = scmp.eq.s32.totalorder %s21, 1
      %p110 = por %p108, %p109
      %p112 = scmp.ne.s32.totalorder %s95, %s111
      %p113 = scmp.eq.s32.totalorder %s21, 0
      %p114 = por %p112, %p113
      %s115 = ssub.s32 %s23, %s30
      %p116 = scmp.eq.s32.totalorder %s115, 0
      %s118 = sadd.s32 %s117, 1
      %s119 = scalar_select %p116, %s117, %s118
      %p122 = pneg %p116
      %p123 = scmp.eq.s32.totalorder %s15, 1
      %p124 = por %p122, %p123
      %p125 = scmp.ne.s32.totalorder %s117, %s120
      %p126 = scmp.eq.s32.totalorder %s15, 0
      %p127 = por %p125, %p126
      %p128 = scmp.ne.s32.totalorder %s117, %s120
      %p129 = scmp.eq.s32.totalorder %s20, 1
      %p130 = por %p128, %p129
      %p131 = scmp.ne.s32.totalorder %s120, %s121
      %p132 = scmp.eq.s32.totalorder %s20, 0
      %p133 = por %p131, %p132
      %p134 = scmp.ne.s32.totalorder %s120, %s121
      %p135 = scmp.eq.s32.totalorder %s21, 1
      %p136 = por %p134, %p135
      %p138 = scmp.ne.s32.totalorder %s121, %s137
      %p139 = scmp.eq.s32.totalorder %s21, 0
      %p140 = por %p138, %p139
      %s141 = ssub.s32 %s22, %s34
      %s142 = ssub.s32 %s23, %s30
      %s143 = sor.u32 %s141, %s142
      %p144 = scmp.eq.s32.totalorder %s143, 0
      %s146 = sadd.s32 %s145, 1
      %s147 = scalar_select %p144, %s145, %s146
      %p150 = pneg %p144
      %p151 = scmp.eq.s32.totalorder %s15, 1
      %p152 = por %p150, %p151
      %p153 = scmp.ne.s32.totalorder %s145, %s148
      %p154 = scmp.eq.s32.totalorder %s15, 0
      %p155 = por %p153, %p154
      %p156 = scmp.ne.s32.totalorder %s145, %s148
      %p157 = scmp.eq.s32.totalorder %s20, 1
      %p158 = por %p156, %p157
      %p159 = scmp.ne.s32.totalorder %s148, %s149
      %p160 = scmp.eq.s32.totalorder %s20, 0
      %p161 = por %p159, %p160
      %p162 = scmp.ne.s32.totalorder %s148, %s149
      %p163 = scmp.eq.s32.totalorder %s21, 1
      %p164 = por %p162, %p163
      %p166 = scmp.ne.s32.totalorder %s149, %s165
      %p167 = scmp.eq.s32.totalorder %s21, 0
      %p168 = por %p166, %p167
      %s169 = ssub.s32 %s22, %s34
      %s170 = ssub.s32 %s23, %s30
      %s171 = sor.u32 %s169, %s170
      %p172 = scmp.eq.s32.totalorder %s171, 0
      %s174 = sadd.s32 %s173, 1
      %s175 = scalar_select %p172, %s173, %s174
      %p178 = pneg %p172
      %p179 = scmp.eq.s32.totalorder %s15, 1
      %p180 = por %p178, %p179
      %p181 = scmp.ne.s32.totalorder %s173, %s176
      %p182 = scmp.eq.s32.totalorder %s15, 0
      %p183 = por %p181, %p182
      %p184 = scmp.ne.s32.totalorder %s173, %s176
      %p185 = scmp.eq.s32.totalorder %s20, 1
      %p186 = por %p184, %p185
      %p187 = scmp.ne.s32.totalorder %s176, %s177
      %p188 = scmp.eq.s32.totalorder %s20, 0
      %p189 = por %p187, %p188
      %p190 = scmp.ne.s32.totalorder %s176, %s177
      %p191 = scmp.eq.s32.totalorder %s21, 1
      %p192 = por %p190, %p191
      %p194 = scmp.ne.s32.totalorder %s177, %s193
      %p195 = scmp.eq.s32.totalorder %s21, 0
      %p196 = por %p194, %p195
      %p197 = scmp.le.s32.totalorder 1, %s15
      %p198 = scmp.lt.s32.totalorder %s15, 3
      %p199 = pnand %p197, %p198
      %p200 = pneg %p199
      // Predicated region
      $region9: #{tpu_custom_call.1} parent=5 // pred_check
        _
      $region10: #{tpu_custom_call.1} parent=5 // pred_check_branch
        %202 = sbr.rel (%p199) target = $region12
      $region11: #{tpu_custom_call.1} parent=5 // pred_region
        %s203 = ssub.s32 %s15, 1
        // Predicated region
        $region13: #{tpu_custom_call.1} parent=11 // pred_check
          %p204 = pneg %p133
        $region14: #{tpu_custom_call.1} parent=11 // pred_check_branch
          %206 = sbr.rel (%p204) target = $region16
        $region15: #{tpu_custom_call.1} parent=11 // pred_region
          %s207 = smul.u32 8, %s25
          %p208 = scmp.lt.s32.totalorder %s207, 7
          %s209 = scalar_select %p208, %s207, 7
          %s210 = smul.addr %s209, 8
          %s211 = scalar_lea.vmem %s3, %s210
          %s212 = smul.u32 8, %s25
        $region16: #{tpu_custom_call.1} parent=11 // pred_fallthru
          _
      $region12: #{tpu_custom_call.1} parent=5 // pred_fallthru
        _
      %p213 = scmp.lt.s32.totalorder %s15, 2
      // Predicated region
      $region17: #{tpu_custom_call.1} parent=5 // pred_check
        %p214 = pneg %p213
      $region18: #{tpu_custom_call.1} parent=5 // pred_check_branch
        %216 = sbr.rel (%p214) target = $region20
      $region19: #{tpu_custom_call.1} parent=5 // pred_region
        // Predicated region
        $region21: #{tpu_custom_call.1} parent=19 // pred_check
          %p217 = pneg %p49
        $region22: #{tpu_custom_call.1} parent=19 // pred_check_branch
          %219 = sbr.rel (%p217) target = $region24
        $region23: #{tpu_custom_call.1} parent=19 // pred_region
          %s220 = smul.u32 32, %s23
          %p221 = scmp.lt.s32.totalorder %s22, 1
          %s222 = scalar_select %p221, %s22, 1
          %p223 = scmp.lt.s32.totalorder %s220, 31
          %s224 = scalar_select %p223, %s220, 31
          %s225 = smul.addr %s222, 32
          %s226 = sadd.s32 %s224, %s225
          %s227 = smul.addr %s226, 8
          %s228 = scalar_lea.vmem %s0, %s227
          %s229 = smul.u32 32, %s23
        $region24: #{tpu_custom_call.1} parent=19 // pred_fallthru
          _
        // Predicated region
        $region25: #{tpu_custom_call.1} parent=19 // pred_check
          %p230 = pneg %p75
        $region26: #{tpu_custom_call.1} parent=19 // pred_check_branch
          %232 = sbr.rel (%p230) target = $region28
        $region27: #{tpu_custom_call.1} parent=19 // pred_region
          %p233 = scmp.lt.s32.totalorder %s22, 1
          %s234 = scalar_select %p233, %s22, 1
          %s235 = smul.addr %s234, 16
          %s236 = smul.addr %s235, 8
          %s237 = scalar_lea.vmem %s1, %s236
        $region28: #{tpu_custom_call.1} parent=19 // pred_fallthru
          _
        // Predicated region
        $region29: #{tpu_custom_call.1} parent=19 // pred_check
          %p238 = pneg %p101
        $region30: #{tpu_custom_call.1} parent=19 // pred_check_branch
          %240 = sbr.rel (%p238) target = $region32
        $region31: #{tpu_custom_call.1} parent=19 // pred_region
          %p241 = scmp.lt.s32.totalorder %s22, 1
          %s242 = scalar_select %p241, %s22, 1
          %s243 = smul.addr %s242, 16
          %s244 = smul.addr %s243, 8
          %s245 = scalar_lea.vmem %s2, %s244
        $region32: #{tpu_custom_call.1} parent=19 // pred_fallthru
          _
      $region20: #{tpu_custom_call.1} parent=5 // pred_fallthru
        _
      %p246 = scmp.le.s32.totalorder 1, %s15
      %p247 = scmp.lt.s32.totalorder %s15, 3
      %p248 = pnand %p246, %p247
      %p249 = pneg %p248
      // Predicated region
      $region33: #{tpu_custom_call.1} parent=5 // pred_check
        _
      $region34: #{tpu_custom_call.1} parent=5 // pred_check_branch
        %251 = sbr.rel (%p248) target = $region36
      $region35: #{tpu_custom_call.1} parent=5 // pred_region
        %s252 = ssub.s32 %s15, 1
        %s253 = smul.u32 32, %s25
        %p254 = scmp.lt.s32.totalorder %s24, 1
        %s255 = scalar_select %p254, %s24, 1
        %p256 = scmp.lt.s32.totalorder %s253, 31
        %s257 = scalar_select %p256, %s253, 31
        %s258 = smul.addr %s255, 32
        %s259 = sadd.s32 %s257, %s258
        %s260 = smul.addr %s259, 8
        %s261 = scalar_lea.vmem %s0, %s260
        %p262 = pneg %p55
        %p263 = pneg %p52
        %p264 = scmp.lt.s32.totalorder %s24, 1
        %s265 = scalar_select %p264, %s24, 1
        %s266 = smul.addr %s265, 16
        %s267 = smul.addr %s266, 8
        %s268 = scalar_lea.vmem %s1, %s267
        %p269 = pneg %p81
        %p270 = pneg %p78
        %p271 = scmp.lt.s32.totalorder %s24, 1
        %s272 = scalar_select %p271, %s24, 1
        %s273 = smul.addr %s272, 16
        %s274 = smul.addr %s273, 8
        %s275 = scalar_lea.vmem %s2, %s274
        %p276 = pneg %p107
        %p277 = pneg %p104
        %s278 = smul.u32 8, %s25
        %p279 = scmp.lt.s32.totalorder %s278, 7
        %s280 = scalar_select %p279, %s278, 7
        %s281 = smul.addr %s280, 8
        %s282 = scalar_lea.vmem %s3, %s281
        %p283 = pneg %p133
        %p284 = pneg %p130
        %p285 = pneg %p161
        %p286 = pneg %p158
        %s287 = sand.u32 %s148, 1
        %s288 = scalar_lea.sflag [#allocation3], %s287
        %s289 = sand.u32 %s148, 1
        %s290 = smul.addr %s289, 256
        %s291 = scalar_lea.vmem [#allocation2], %s290
        %p292 = pneg %p189
        %p293 = pneg %p186
        %s294 = smul.u32 32, %s25
        %p295 = scmp.lt.s32.totalorder %s24, 1
        %s296 = scalar_select %p295, %s24, 1
        %p297 = scmp.lt.s32.totalorder %s294, 31
        %s298 = scalar_select %p297, %s294, 31
        %s299 = smul.addr %s296, 32
        %s300 = sadd.s32 %s298, %s299
        %s301 = smul.addr %s300, 8
        %s302 = scalar_lea.vmem %s5, %s301
        %s303 = smul.u32 32, %s25
        %p304 = scmp.lt.s32.totalorder %s24, 1
        %s305 = scalar_select %p304, %s24, 1
        %p306 = scmp.lt.s32.totalorder %s303, 31
        %s307 = scalar_select %p306, %s303, 31
        %s308 = smul.addr %s305, 32
        %s309 = sadd.s32 %s307, %s308
        %s310 = smul.addr %s309, 8
        %s311 = scalar_lea.vmem %s0, %s310
        %s312 = smul.u32 32, %s25
        %p313 = scmp.lt.s32.totalorder %s24, 1
        %s314 = scalar_select %p313, %s24, 1
        %s315 = smul.addr %s314, 16
        %s316 = smul.addr %s315, 8
        %s317 = scalar_lea.vmem %s1, %s316
        %p318 = scmp.lt.s32.totalorder %s24, 1
        %s319 = scalar_select %p318, %s24, 1
        %s320 = smul.addr %s319, 16
        %s321 = smul.addr %s320, 8
        %s322 = scalar_lea.vmem %s2, %s321
        %s323 = smul.u32 8, %s25
        %p324 = scmp.lt.s32.totalorder %s323, 7
        %s325 = scalar_select %p324, %s323, 7
        %s326 = smul.addr %s325, 8
        %s327 = scalar_lea.vmem %s3, %s326
        %s328 = smul.u32 8, %s25
        %s329 = smul.u32 32, %s25
        %s330 = smul.u32 32, %s25
        %p331 = scmp.lt.s32.totalorder %s24, 1
        %s332 = scalar_select %p331, %s24, 1
        %p333 = scmp.lt.s32.totalorder %s330, 31
        %s334 = scalar_select %p333, %s330, 31
        %s335 = smul.addr %s332, 32
        %s336 = sadd.s32 %s334, %s335
        %s337 = smul.addr %s336, 8
        %s338 = scalar_lea.vmem %s5, %s337
        %s339 = smul.u32 32, %s25
        %v342 = vld [vmem:[%s311] sm:$0xff]
        %v343 = vld [vmem:[%s311 + $0x8] sm:$0xff]
        %v344 = vld [vmem:[%s311 + $0x10] sm:$0xff]
        %v345 = vld [vmem:[%s311 + $0x18] sm:$0xff]
        %v346 = vld [vmem:[%s311 + $0x20] sm:$0xff]
        %v347 = vld [vmem:[%s311 + $0x28] sm:$0xff]
        %v348 = vld [vmem:[%s311 + $0x30] sm:$0xff]
        %v349 = vld [vmem:[%s311 + $0x38] sm:$0xff]
        %v350 = vld [vmem:[%s311 + $0x40] sm:$0xff]
        %v351 = vld [vmem:[%s311 + $0x48] sm:$0xff]
        %v352 = vld [vmem:[%s311 + $0x50] sm:$0xff]
        %v353 = vld [vmem:[%s311 + $0x58] sm:$0xff]
        %v354 = vld [vmem:[%s311 + $0x60] sm:$0xff]
        %v355 = vld [vmem:[%s311 + $0x68] sm:$0xff]
        %v356 = vld [vmem:[%s311 + $0x70] sm:$0xff]
        %v357 = vld [vmem:[%s311 + $0x78] sm:$0xff]
        %v358 = vld [vmem:[%s311 + $0x80] sm:$0xff]
        %v359 = vld [vmem:[%s311 + $0x88] sm:$0xff]
        %v360 = vld [vmem:[%s311 + $0x90] sm:$0xff]
        %v361 = vld [vmem:[%s311 + $0x98] sm:$0xff]
        %v362 = vld [vmem:[%s311 + $0xa0] sm:$0xff]
        %v363 = vld [vmem:[%s311 + $0xa8] sm:$0xff]
        %v364 = vld [vmem:[%s311 + $0xb0] sm:$0xff]
        %v365 = vld [vmem:[%s311 + $0xb8] sm:$0xff]
        %v366 = vld [vmem:[%s311 + $0xc0] sm:$0xff]
        %v367 = vld [vmem:[%s311 + $0xc8] sm:$0xff]
        %v368 = vld [vmem:[%s311 + $0xd0] sm:$0xff]
        %v369 = vld [vmem:[%s311 + $0xd8] sm:$0xff]
        %v370 = vld [vmem:[%s311 + $0xe0] sm:$0xff]
        %v371 = vld [vmem:[%s311 + $0xe8] sm:$0xff]
        %v372 = vld [vmem:[%s311 + $0xf0] sm:$0xff]
        %v373 = vld [vmem:[%s311 + $0xf8] sm:$0xff]
        %v374 = vld [vmem:[%s317] sm:$0xff]
        %v375 = vld [vmem:[%s317 + $0x8] sm:$0xff]
        %v376 = vld [vmem:[%s317 + $0x10] sm:$0xff]
        %v377 = vld [vmem:[%s317 + $0x18] sm:$0xff]
        %v378 = vld [vmem:[%s317 + $0x20] sm:$0xff]
        %v379 = vld [vmem:[%s317 + $0x28] sm:$0xff]
        %v380 = vld [vmem:[%s317 + $0x30] sm:$0xff]
        %v381 = vld [vmem:[%s317 + $0x38] sm:$0xff]
        %v382 = vld [vmem:[%s317 + $0x40] sm:$0xff]
        %v383 = vld [vmem:[%s317 + $0x48] sm:$0xff]
        %v384 = vld [vmem:[%s317 + $0x50] sm:$0xff]
        %v385 = vld [vmem:[%s317 + $0x58] sm:$0xff]
        %v386 = vld [vmem:[%s317 + $0x60] sm:$0xff]
        %v387 = vld [vmem:[%s317 + $0x68] sm:$0xff]
        %v388 = vld [vmem:[%s317 + $0x70] sm:$0xff]
        %v389 = vld [vmem:[%s317 + $0x78] sm:$0xff]
        %v390 = vld [vmem:[%s322] sm:$0xff]
        %v391 = vld [vmem:[%s322 + $0x8] sm:$0xff]
        %v392 = vld [vmem:[%s322 + $0x10] sm:$0xff]
        %v393 = vld [vmem:[%s322 + $0x18] sm:$0xff]
        %v394 = vld [vmem:[%s322 + $0x20] sm:$0xff]
        %v395 = vld [vmem:[%s322 + $0x28] sm:$0xff]
        %v396 = vld [vmem:[%s322 + $0x30] sm:$0xff]
        %v397 = vld [vmem:[%s322 + $0x38] sm:$0xff]
        %v398 = vld [vmem:[%s322 + $0x40] sm:$0xff]
        %v399 = vld [vmem:[%s322 + $0x48] sm:$0xff]
        %v400 = vld [vmem:[%s322 + $0x50] sm:$0xff]
        %v401 = vld [vmem:[%s322 + $0x58] sm:$0xff]
        %v402 = vld [vmem:[%s322 + $0x60] sm:$0xff]
        %v403 = vld [vmem:[%s322 + $0x68] sm:$0xff]
        %v404 = vld [vmem:[%s322 + $0x70] sm:$0xff]
        %v405 = vld [vmem:[%s322 + $0x78] sm:$0xff]
        %vm406 = vcmask 523264
        %v408 = vsel %vm406, %v342, 0
        %v411 = vsel %vm406, %v343, 0
        %v414 = vsel %vm406, %v344, 0
        %v417 = vsel %vm406, %v345, 0
        %v420 = vsel %vm406, %v346, 0
        %v423 = vsel %vm406, %v347, 0
        %v426 = vsel %vm406, %v348, 0
        %v429 = vsel %vm406, %v349, 0
        %v432 = vsel %vm406, %v350, 0
        %v435 = vsel %vm406, %v351, 0
        %v438 = vsel %vm406, %v352, 0
        %v441 = vsel %vm406, %v353, 0
        %v444 = vsel %vm406, %v354, 0
        %v447 = vsel %vm406, %v355, 0
        %v450 = vsel %vm406, %v356, 0
        %v453 = vsel %vm406, %v357, 0
        %v456 = vsel %vm406, %v358, 0
        %v459 = vsel %vm406, %v359, 0
        %v462 = vsel %vm406, %v360, 0
        %v465 = vsel %vm406, %v361, 0
        %v468 = vsel %vm406, %v362, 0
        %v471 = vsel %vm406, %v363, 0
        %v474 = vsel %vm406, %v364, 0
        %v477 = vsel %vm406, %v365, 0
        %v480 = vsel %vm406, %v366, 0
        %v483 = vsel %vm406, %v367, 0
        %v486 = vsel %vm406, %v368, 0
        %v489 = vsel %vm406, %v369, 0
        %v492 = vsel %vm406, %v370, 0
        %v495 = vsel %vm406, %v371, 0
        %v498 = vsel %vm406, %v372, 0
        %v501 = vsel %vm406, %v373, 0
        %v504 = vsel %vm406, %v374, 0
        %v507 = vsel %vm406, %v375, 0
        %v510 = vsel %vm406, %v376, 0
        %v513 = vsel %vm406, %v377, 0
        %v516 = vsel %vm406, %v378, 0
        %v519 = vsel %vm406, %v379, 0
        %v522 = vsel %vm406, %v380, 0
        %v525 = vsel %vm406, %v381, 0
        %v528 = vsel %vm406, %v382, 0
        %v531 = vsel %vm406, %v383, 0
        %v534 = vsel %vm406, %v384, 0
        %v537 = vsel %vm406, %v385, 0
        %v540 = vsel %vm406, %v386, 0
        %v543 = vsel %vm406, %v387, 0
        %v546 = vsel %vm406, %v388, 0
        %v549 = vsel %vm406, %v389, 0
        %551 = vmatprep.subr.mxu0 0.0
        %552 = vmatpush1.xpose.msra.mxu0 %v504
        %553 = vmatprep.subr.mxu0 0.0
        %554 = vmatpush1.xpose.msra.mxu0 %v507
        %555 = vmatprep.subr.mxu0 0.0
        %556 = vmatpush1.xpose.msra.mxu0 %v510
        %557 = vmatprep.subr.mxu0 0.0
        %558 = vmatpush1.xpose.msra.mxu0 %v513
        %559 = vmatprep.subr.mxu0 0.0
        %560 = vmatpush1.xpose.msra.mxu0 %v516
        %561 = vmatprep.subr.mxu0 0.0
        %562 = vmatpush1.xpose.msra.mxu0 %v519
        %563 = vmatprep.subr.mxu0 0.0
        %564 = vmatpush1.xpose.msra.mxu0 %v522
        %565 = vmatprep.subr.mxu0 0.0
        %566 = vmatpush1.xpose.msra.mxu0 %v525
        %567 = vmatprep.subr.mxu0 0.0
        %568 = vmatpush1.xpose.msra.mxu0 %v528
        %569 = vmatprep.subr.mxu0 0.0
        %570 = vmatpush1.xpose.msra.mxu0 %v531
        %571 = vmatprep.subr.mxu0 0.0
        %572 = vmatpush1.xpose.msra.mxu0 %v534
        %573 = vmatprep.subr.mxu0 0.0
        %574 = vmatpush1.xpose.msra.mxu0 %v537
        %575 = vmatprep.subr.mxu0 0.0
        %576 = vmatpush1.xpose.msra.mxu0 %v540
        %577 = vmatprep.subr.mxu0 0.0
        %578 = vmatpush1.xpose.msra.mxu0 %v543
        %579 = vmatprep.subr.mxu0 0.0
        %580 = vmatpush1.xpose.msra.mxu0 %v546
        %581 = vmatprep.subr.mxu0 0.0
        %582 = vmatpush1.xpose.msra.mxu0 %v549
        %583 = vmatprep.subr.mxu0 0.0
        %584 = vmatpush1.xpose.msra.mxu0 0.0
        %585 = vmatprep.subr.mxu0 0.0
        %586 = vmatpush1.xpose.msra.mxu0 0.0
        %587 = vmatprep.subr.mxu0 0.0
        %588 = vmatpush1.xpose.msra.mxu0 0.0
        %589 = vmatprep.subr.mxu0 0.0
        %590 = vmatpush1.xpose.msra.mxu0 0.0
        %591 = vmatprep.subr.mxu0 0.0
        %592 = vmatpush1.xpose.msra.mxu0 0.0
        %593 = vmatprep.subr.mxu0 0.0
        %594 = vmatpush1.xpose.msra.mxu0 0.0
        %595 = vmatprep.subr.mxu0 0.0
        %596 = vmatpush1.xpose.msra.mxu0 0.0
        %597 = vmatprep.subr.mxu0 0.0
        %598 = vmatpush1.xpose.msra.mxu0 0.0
        %599 = vmatprep.subr.mxu0 0.0
        %600 = vmatpush1.xpose.msra.mxu0 0.0
        %601 = vmatprep.subr.mxu0 0.0
        %602 = vmatpush1.xpose.msra.mxu0 0.0
        %603 = vmatprep.subr.mxu0 0.0
        %604 = vmatpush1.xpose.msra.mxu0 0.0
        %605 = vmatprep.subr.mxu0 0.0
        %606 = vmatpush1.xpose.msra.mxu0 0.0
        %607 = vmatprep.subr.mxu0 0.0
        %608 = vmatpush1.xpose.msra.mxu0 0.0
        %609 = vmatprep.subr.mxu0 0.0
        %610 = vmatpush1.xpose.msra.mxu0 0.0
        %611 = vmatprep.subr.mxu0 0.0
        %612 = vmatpush1.xpose.msra.mxu0 0.0
        %613 = vmatprep.subr.mxu0 0.0
        %614 = vmatpush1.xpose.msra.mxu0 0.0
        %615 = vmatprep.mubr.f32.mxu0 0.0
        %616 = vmatmul.mubr.f32.gmra.mrb[0].mxu0 %v408
        %v617 = vpop.f32.mrb[0].mxu0
        %v618 = vadd.f32 0.0, %v617
        %v619 = vpop.f32.mrb[0].mxu0
        %620 = vmatprep.mubr.f32.mxu0 0.0
        %621 = vmatmul.mubr.f32.gmra.mrb[0].mxu0 %v411
        %v622 = vpop.f32.mrb[0].mxu0
        %v623 = vadd.f32 0.0, %v622
        %v624 = vpop.f32.mrb[0].mxu0
        %625 = vmatprep.mubr.f32.mxu0 0.0
        %626 = vmatmul.mubr.f32.gmra.mrb[0].mxu0 %v414
        %v627 = vpop.f32.mrb[0].mxu0
        %v628 = vadd.f32 0.0, %v627
        %v629 = vpop.f32.mrb[0].mxu0
        %630 = vmatprep.mubr.f32.mxu0 0.0
        %631 = vmatmul.mubr.f32.gmra.mrb[0].mxu0 %v417
        %v632 = vpop.f32.mrb[0].mxu0
        %v633 = vadd.f32 0.0, %v632
        %v634 = vpop.f32.mrb[0].mxu0
        %635 = vmatprep.mubr.f32.mxu0 0.0
        %636 = vmatmul.mubr.f32.gmra.mrb[0].mxu0 %v420
        %v637 = vpop.f32.mrb[0].mxu0
        %v638 = vadd.f32 0.0, %v637
        %v639 = vpop.f32.mrb[0].mxu0
        %640 = vmatprep.mubr.f32.mxu0 0.0
        %641 = vmatmul.mubr.f32.gmra.mrb[0].mxu0 %v423
        %v642 = vpop.f32.mrb[0].mxu0
        %v643 = vadd.f32 0.0, %v642
        %v644 = vpop.f32.mrb[0].mxu0
        %645 = vmatprep.mubr.f32.mxu0 0.0
        %646 = vmatmul.mubr.f32.gmra.mrb[0].mxu0 %v426
        %v647 = vpop.f32.mrb[0].mxu0
        %v648 = vadd.f32 0.0, %v647
        %v649 = vpop.f32.mrb[0].mxu0
        %650 = vmatprep.mubr.f32.mxu0 0.0
        %651 = vmatmul.mubr.f32.gmra.mrb[0].mxu0 %v429
        %v652 = vpop.f32.mrb[0].mxu0
        %v653 = vadd.f32 0.0, %v652
        %v654 = vpop.f32.mrb[0].mxu0
        %655 = vmatprep.mubr.f32.mxu0 0.0
        %656 = vmatmul.mubr.f32.gmra.mrb[0].mxu0 %v432
        %v657 = vpop.f32.mrb[0].mxu0
        %v658 = vadd.f32 0.0, %v657
        %v659 = vpop.f32.mrb[0].mxu0
        %660 = vmatprep.mubr.f32.mxu0 0.0
        %661 = vmatmul.mubr.f32.gmra.mrb[0].mxu0 %v435
        %v662 = vpop.f32.mrb[0].mxu0
        %v663 = vadd.f32 0.0, %v662
        %v664 = vpop.f32.mrb[0].mxu0
        %665 = vmatprep.mubr.f32.mxu0 0.0
        %666 = vmatmul.mubr.f32.gmra.mrb[0].mxu0 %v438
        %v667 = vpop.f32.mrb[0].mxu0
        %v668 = vadd.f32 0.0, %v667
        %v669 = vpop.f32.mrb[0].mxu0
        %670 = vmatprep.mubr.f32.mxu0 0.0
        %671 = vmatmul.mubr.f32.gmra.mrb[0].mxu0 %v441
        %v672 = vpop.f32.mrb[0].mxu0
        %v673 = vadd.f32 0.0, %v672
        %v674 = vpop.f32.mrb[0].mxu0
        %675 = vmatprep.mubr.f32.mxu0 0.0
        %676 = vmatmul.mubr.f32.gmra.mrb[0].mxu0 %v444
        %v677 = vpop.f32.mrb[0].mxu0
        %v678 = vadd.f32 0.0, %v677
        %v679 = vpop.f32.mrb[0].mxu0
        %680 = vmatprep.mubr.f32.mxu0 0.0
        %681 = vmatmul.mubr.f32.gmra.mrb[0].mxu0 %v447
        %v682 = vpop.f32.mrb[0].mxu0
        %v683 = vadd.f32 0.0, %v682
        %v684 = vpop.f32.mrb[0].mxu0
        %685 = vmatprep.mubr.f32.mxu0 0.0
        %686 = vmatmul.mubr.f32.gmra.mrb[0].mxu0 %v450
        %v687 = vpop.f32.mrb[0].mxu0
        %v688 = vadd.f32 0.0, %v687
        %v689 = vpop.f32.mrb[0].mxu0
        %690 = vmatprep.mubr.f32.mxu0 0.0
        %691 = vmatmul.mubr.f32.gmra.mrb[0].mxu0 %v453
        %v692 = vpop.f32.mrb[0].mxu0
        %v693 = vadd.f32 0.0, %v692
        %v694 = vpop.f32.mrb[0].mxu0
        %695 = vmatprep.mubr.f32.mxu0 0.0
        %696 = vmatmul.mubr.f32.gmra.mrb[0].mxu0 %v456
        %v697 = vpop.f32.mrb[0].mxu0
        %v698 = vadd.f32 0.0, %v697
        %v699 = vpop.f32.mrb[0].mxu0
        %700 = vmatprep.mubr.f32.mxu0 0.0
        %701 = vmatmul.mubr.f32.gmra.mrb[0].mxu0 %v459
        %v702 = vpop.f32.mrb[0].mxu0
        %v703 = vadd.f32 0.0, %v702
        %v704 = vpop.f32.mrb[0].mxu0
        %705 = vmatprep.mubr.f32.mxu0 0.0
        %706 = vmatmul.mubr.f32.gmra.mrb[0].mxu0 %v462
        %v707 = vpop.f32.mrb[0].mxu0
        %v708 = vadd.f32 0.0, %v707
        %v709 = vpop.f32.mrb[0].mxu0
        %710 = vmatprep.mubr.f32.mxu0 0.0
        %711 = vmatmul.mubr.f32.gmra.mrb[0].mxu0 %v465
        %v712 = vpop.f32.mrb[0].mxu0
        %v713 = vadd.f32 0.0, %v712
        %v714 = vpop.f32.mrb[0].mxu0
        %715 = vmatprep.mubr.f32.mxu0 0.0
        %716 = vmatmul.mubr.f32.gmra.mrb[0].mxu0 %v468
        %v717 = vpop.f32.mrb[0].mxu0
        %v718 = vadd.f32 0.0, %v717
        %v719 = vpop.f32.mrb[0].mxu0
        %720 = vmatprep.mubr.f32.mxu0 0.0
        %721 = vmatmul.mubr.f32.gmra.mrb[0].mxu0 %v471
        %v722 = vpop.f32.mrb[0].mxu0
        %v723 = vadd.f32 0.0, %v722
        %v724 = vpop.f32.mrb[0].mxu0
        %725 = vmatprep.mubr.f32.mxu0 0.0
        %726 = vmatmul.mubr.f32.gmra.mrb[0].mxu0 %v474
        %v727 = vpop.f32.mrb[0].mxu0
        %v728 = vadd.f32 0.0, %v727
        %v729 = vpop.f32.mrb[0].mxu0
        %730 = vmatprep.mubr.f32.mxu0 0.0
        %731 = vmatmul.mubr.f32.gmra.mrb[0].mxu0 %v477
        %v732 = vpop.f32.mrb[0].mxu0
        %v733 = vadd.f32 0.0, %v732
        %v734 = vpop.f32.mrb[0].mxu0
        %735 = vmatprep.mubr.f32.mxu0 0.0
        %736 = vmatmul.mubr.f32.gmra.mrb[0].mxu0 %v480
        %v737 = vpop.f32.mrb[0].mxu0
        %v738 = vadd.f32 0.0, %v737
        %v739 = vpop.f32.mrb[0].mxu0
        %740 = vmatprep.mubr.f32.mxu0 0.0
        %741 = vmatmul.mubr.f32.gmra.mrb[0].mxu0 %v483
        %v742 = vpop.f32.mrb[0].mxu0
        %v743 = vadd.f32 0.0, %v742
        %v744 = vpop.f32.mrb[0].mxu0
        %745 = vmatprep.mubr.f32.mxu0 0.0
        %746 = vmatmul.mubr.f32.gmra.mrb[0].mxu0 %v486
        %v747 = vpop.f32.mrb[0].mxu0
        %v748 = vadd.f32 0.0, %v747
        %v749 = vpop.f32.mrb[0].mxu0
        %750 = vmatprep.mubr.f32.mxu0 0.0
        %751 = vmatmul.mubr.f32.gmra.mrb[0].mxu0 %v489
        %v752 = vpop.f32.mrb[0].mxu0
        %v753 = vadd.f32 0.0, %v752
        %v754 = vpop.f32.mrb[0].mxu0
        %755 = vmatprep.mubr.f32.mxu0 0.0
        %756 = vmatmul.mubr.f32.gmra.mrb[0].mxu0 %v492
        %v757 = vpop.f32.mrb[0].mxu0
        %v758 = vadd.f32 0.0, %v757
        %v759 = vpop.f32.mrb[0].mxu0
        %760 = vmatprep.mubr.f32.mxu0 0.0
        %761 = vmatmul.mubr.f32.gmra.mrb[0].mxu0 %v495
        %v762 = vpop.f32.mrb[0].mxu0
        %v763 = vadd.f32 0.0, %v762
        %v764 = vpop.f32.mrb[0].mxu0
        %765 = vmatprep.mubr.f32.mxu0 0.0
        %766 = vmatmul.mubr.f32.gmra.mrb[0].mxu0 %v498
        %v767 = vpop.f32.mrb[0].mxu0
        %v768 = vadd.f32 0.0, %v767
        %v769 = vpop.f32.mrb[0].mxu0
        %770 = vmatprep.mubr.f32.mxu0 0.0
        %771 = vmatmul.mubr.f32.gmra.mrb[0].mxu0 %v501
        %v772 = vpop.f32.mrb[0].mxu0
        %v773 = vadd.f32 0.0, %v772
        %v774 = vpop.f32.mrb[0].mxu0
        %775 = vdwg.mxu0
        %v776 = vmul.f32 %v618, 0.125
        %v777 = vmul.f32 %v623, 0.125
        %v778 = vmul.f32 %v628, 0.125
        %v779 = vmul.f32 %v633, 0.125
        %v780 = vmul.f32 %v638, 0.125
        %v781 = vmul.f32 %v643, 0.125
        %v782 = vmul.f32 %v648, 0.125
        %v783 = vmul.f32 %v653, 0.125
        %v784 = vmul.f32 %v658, 0.125
        %v785 = vmul.f32 %v663, 0.125
        %v786 = vmul.f32 %v668, 0.125
        %v787 = vmul.f32 %v673, 0.125
        %v788 = vmul.f32 %v678, 0.125
        %v789 = vmul.f32 %v683, 0.125
        %v790 = vmul.f32 %v688, 0.125
        %v791 = vmul.f32 %v693, 0.125
        %v792 = vmul.f32 %v698, 0.125
        %v793 = vmul.f32 %v703, 0.125
        %v794 = vmul.f32 %v708, 0.125
        %v795 = vmul.f32 %v713, 0.125
        %v796 = vmul.f32 %v718, 0.125
        %v797 = vmul.f32 %v723, 0.125
        %v798 = vmul.f32 %v728, 0.125
        %v799 = vmul.f32 %v733, 0.125
        %v800 = vmul.f32 %v738, 0.125
        %v801 = vmul.f32 %v743, 0.125
        %v802 = vmul.f32 %v748, 0.125
        %v803 = vmul.f32 %v753, 0.125
        %v804 = vmul.f32 %v758, 0.125
        %v805 = vmul.f32 %v763, 0.125
        %v806 = vmul.f32 %v768, 0.125
        %v807 = vmul.f32 %v773, 0.125
        %v808 = vld [vmem:[%s327] sm:$0xff]
        %v809 = vld [vmem:[%s327 + $0x8] sm:$0xff]
        %v810 = vld [vmem:[%s327 + $0x10] sm:$0xff]
        %v811 = vld [vmem:[%s327 + $0x18] sm:$0xff]
        %v812 = vld [vmem:[%s327 + $0x20] sm:$0xff]
        %v813 = vld [vmem:[%s327 + $0x28] sm:$0xff]
        %v814 = vld [vmem:[%s327 + $0x30] sm:$0xff]
        %v815 = vld [vmem:[%s327 + $0x38] sm:$0xff]
        %vm816 = vnez %v808
        %vm817 = vnez %v809
        %vm818 = vnez %v810
        %vm819 = vnez %v811
        %vm820 = vnez %v812
        %vm821 = vnez %v813
        %vm822 = vnez %v814
        %vm823 = vnez %v815
        %v824 = vsel %vm816, 16843009, 0
        %v825 = vsel %vm817, 16843009, 0
        %v826 = vsel %vm818, 16843009, 0
        %v827 = vsel %vm819, 16843009, 0
        %v828 = vsel %vm820, 16843009, 0
        %v829 = vsel %vm821, 16843009, 0
        %v830 = vsel %vm822, 16843009, 0
        %v831 = vsel %vm823, 16843009, 0
        %v832 = vunpack.c.0.s8 %v824
        %v833 = vunpack.c.1.s8 %v824
        %v834 = vunpack.c.2.s8 %v824
        %v835 = vunpack.c.3.s8 %v824
        %v836 = vunpack.c.0.s8 %v825
        %v837 = vunpack.c.1.s8 %v825
        %v838 = vunpack.c.2.s8 %v825
        %v839 = vunpack.c.3.s8 %v825
        %v840 = vunpack.c.0.s8 %v826
        %v841 = vunpack.c.1.s8 %v826
        %v842 = vunpack.c.2.s8 %v826
        %v843 = vunpack.c.3.s8 %v826
        %v844 = vunpack.c.0.s8 %v827
        %v845 = vunpack.c.1.s8 %v827
        %v846 = vunpack.c.2.s8 %v827
        %v847 = vunpack.c.3.s8 %v827
        %v848 = vunpack.c.0.s8 %v828
        %v849 = vunpack.c.1.s8 %v828
        %v850 = vunpack.c.2.s8 %v828
        %v851 = vunpack.c.3.s8 %v828
        %v852 = vunpack.c.0.s8 %v829
        %v853 = vunpack.c.1.s8 %v829
        %v854 = vunpack.c.2.s8 %v829
        %v855 = vunpack.c.3.s8 %v829
        %v856 = vunpack.c.0.s8 %v830
        %v857 = vunpack.c.1.s8 %v830
        %v858 = vunpack.c.2.s8 %v830
        %v859 = vunpack.c.3.s8 %v830
        %v860 = vunpack.c.0.s8 %v831
        %v861 = vunpack.c.1.s8 %v831
        %v862 = vunpack.c.2.s8 %v831
        %v863 = vunpack.c.3.s8 %v831
        %v864 = vpack.c.b16 %v832, %v832
        %v865 = vpack.c.b8 %v864, %v864
        %v866 = vpack.c.b16 %v833, %v833
        %v867 = vpack.c.b8 %v866, %v866
        %v868 = vpack.c.b16 %v834, %v834
        %v869 = vpack.c.b8 %v868, %v868
        %v870 = vpack.c.b16 %v835, %v835
        %v871 = vpack.c.b8 %v870, %v870
        %v872 = vpack.c.b16 %v836, %v836
        %v873 = vpack.c.b8 %v872, %v872
        %v874 = vpack.c.b16 %v837, %v837
        %v875 = vpack.c.b8 %v874, %v874
        %v876 = vpack.c.b16 %v838, %v838
        %v877 = vpack.c.b8 %v876, %v876
        %v878 = vpack.c.b16 %v839, %v839
        %v879 = vpack.c.b8 %v878, %v878
        %v880 = vpack.c.b16 %v840, %v840
        %v881 = vpack.c.b8 %v880, %v880
        %v882 = vpack.c.b16 %v841, %v841
        %v883 = vpack.c.b8 %v882, %v882
        %v884 = vpack.c.b16 %v842, %v842
        %v885 = vpack.c.b8 %v884, %v884
        %v886 = vpack.c.b16 %v843, %v843
        %v887 = vpack.c.b8 %v886, %v886
        %v888 = vpack.c.b16 %v844, %v844
        %v889 = vpack.c.b8 %v888, %v888
        %v890 = vpack.c.b16 %v845, %v845
        %v891 = vpack.c.b8 %v890, %v890
        %v892 = vpack.c.b16 %v846, %v846
        %v893 = vpack.c.b8 %v892, %v892
        %v894 = vpack.c.b16 %v847, %v847
        %v895 = vpack.c.b8 %v894, %v894
        %v896 = vpack.c.b16 %v848, %v848
        %v897 = vpack.c.b8 %v896, %v896
        %v898 = vpack.c.b16 %v849, %v849
        %v899 = vpack.c.b8 %v898, %v898
        %v900 = vpack.c.b16 %v850, %v850
        %v901 = vpack.c.b8 %v900, %v900
        %v902 = vpack.c.b16 %v851, %v851
        %v903 = vpack.c.b8 %v902, %v902
        %v904 = vpack.c.b16 %v852, %v852
        %v905 = vpack.c.b8 %v904, %v904
        %v906 = vpack.c.b16 %v853, %v853
        %v907 = vpack.c.b8 %v906, %v906
        %v908 = vpack.c.b16 %v854, %v854
        %v909 = vpack.c.b8 %v908, %v908
        %v910 = vpack.c.b16 %v855, %v855
        %v911 = vpack.c.b8 %v910, %v910
        %v912 = vpack.c.b16 %v856, %v856
        %v913 = vpack.c.b8 %v912, %v912
        %v914 = vpack.c.b16 %v857, %v857
        %v915 = vpack.c.b8 %v914, %v914
        %v916 = vpack.c.b16 %v858, %v858
        %v917 = vpack.c.b8 %v916, %v916
        %v918 = vpack.c.b16 %v859, %v859
        %v919 = vpack.c.b8 %v918, %v918
        %v920 = vpack.c.b16 %v860, %v860
        %v921 = vpack.c.b8 %v920, %v920
        %v922 = vpack.c.b16 %v861, %v861
        %v923 = vpack.c.b8 %v922, %v922
        %v924 = vpack.c.b16 %v862, %v862
        %v925 = vpack.c.b8 %v924, %v924
        %v926 = vpack.c.b16 %v863, %v863
        %v927 = vpack.c.b8 %v926, %v926
        %vm928 = vnez %v865
        %vm929 = vnez %v867
        %vm930 = vnez %v869
        %vm931 = vnez %v871
        %vm932 = vnez %v873
        %vm933 = vnez %v875
        %vm934 = vnez %v877
        %vm935 = vnez %v879
        %vm936 = vnez %v881
        %vm937 = vnez %v883
        %vm938 = vnez %v885
        %vm939 = vnez %v887
        %vm940 = vnez %v889
        %vm941 = vnez %v891
        %vm942 = vnez %v893
        %vm943 = vnez %v895
        %vm944 = vnez %v897
        %vm945 = vnez %v899
        %vm946 = vnez %v901
        %vm947 = vnez %v903
        %vm948 = vnez %v905
        %vm949 = vnez %v907
        %vm950 = vnez %v909
        %vm951 = vnez %v911
        %vm952 = vnez %v913
        %vm953 = vnez %v915
        %vm954 = vnez %v917
        %vm955 = vnez %v919
        %vm956 = vnez %v921
        %vm957 = vnez %v923
        %vm958 = vnez %v925
        %vm959 = vnez %v927
        %v960 = vsel %vm928, 16843009, 0
        %v961 = vsel %vm929, 16843009, 0
        %v962 = vsel %vm930, 16843009, 0
        %v963 = vsel %vm931, 16843009, 0
        %v964 = vsel %vm932, 16843009, 0
        %v965 = vsel %vm933, 16843009, 0
        %v966 = vsel %vm934, 16843009, 0
        %v967 = vsel %vm935, 16843009, 0
        %v968 = vsel %vm936, 16843009, 0
        %v969 = vsel %vm937, 16843009, 0
        %v970 = vsel %vm938, 16843009, 0
        %v971 = vsel %vm939, 16843009, 0
        %v972 = vsel %vm940, 16843009, 0
        %v973 = vsel %vm941, 16843009, 0
        %v974 = vsel %vm942, 16843009, 0
        %v975 = vsel %vm943, 16843009, 0
        %v976 = vsel %vm944, 16843009, 0
        %v977 = vsel %vm945, 16843009, 0
        %v978 = vsel %vm946, 16843009, 0
        %v979 = vsel %vm947, 16843009, 0
        %v980 = vsel %vm948, 16843009, 0
        %v981 = vsel %vm949, 16843009, 0
        %v982 = vsel %vm950, 16843009, 0
        %v983 = vsel %vm951, 16843009, 0
        %v984 = vsel %vm952, 16843009, 0
        %v985 = vsel %vm953, 16843009, 0
        %v986 = vsel %vm954, 16843009, 0
        %v987 = vsel %vm955, 16843009, 0
        %v988 = vsel %vm956, 16843009, 0
        %v989 = vsel %vm957, 16843009, 0
        %v990 = vsel %vm958, 16843009, 0
        %v991 = vsel %vm959, 16843009, 0
        %v992 = vunpack.c.0.s8 %v960
        %v993 = vunpack.c.0.s8 %v961
        %v994 = vunpack.c.0.s8 %v962
        %v995 = vunpack.c.0.s8 %v963
        %v996 = vunpack.c.0.s8 %v964
        %v997 = vunpack.c.0.s8 %v965
        %v998 = vunpack.c.0.s8 %v966
        %v999 = vunpack.c.0.s8 %v967
        %v1000 = vunpack.c.0.s8 %v968
        %v1001 = vunpack.c.0.s8 %v969
        %v1002 = vunpack.c.0.s8 %v970
        %v1003 = vunpack.c.0.s8 %v971
        %v1004 = vunpack.c.0.s8 %v972
        %v1005 = vunpack.c.0.s8 %v973
        %v1006 = vunpack.c.0.s8 %v974
        %v1007 = vunpack.c.0.s8 %v975
        %v1008 = vunpack.c.0.s8 %v976
        %v1009 = vunpack.c.0.s8 %v977
        %v1010 = vunpack.c.0.s8 %v978
        %v1011 = vunpack.c.0.s8 %v979
        %v1012 = vunpack.c.0.s8 %v980
        %v1013 = vunpack.c.0.s8 %v981
        %v1014 = vunpack.c.0.s8 %v982
        %v1015 = vunpack.c.0.s8 %v983
        %v1016 = vunpack.c.0.s8 %v984
        %v1017 = vunpack.c.0.s8 %v985
        %v1018 = vunpack.c.0.s8 %v986
        %v1019 = vunpack.c.0.s8 %v987
        %v1020 = vunpack.c.0.s8 %v988
        %v1021 = vunpack.c.0.s8 %v989
        %v1022 = vunpack.c.0.s8 %v990
        %v1023 = vunpack.c.0.s8 %v991
        %vm1024 = vcmp.ne.s32.totalorder %v992, 0
        %vm1025 = vcmp.ne.s32.totalorder %v993, 0
        %vm1026 = vcmp.ne.s32.totalorder %v994, 0
        %vm1027 = vcmp.ne.s32.totalorder %v995, 0
        %vm1028 = vcmp.ne.s32.totalorder %v996, 0
        %vm1029 = vcmp.ne.s32.totalorder %v997, 0
        %vm1030 = vcmp.ne.s32.totalorder %v998, 0
        %vm1031 = vcmp.ne.s32.totalorder %v999, 0
        %vm1032 = vcmp.ne.s32.totalorder %v1000, 0
        %vm1033 = vcmp.ne.s32.totalorder %v1001, 0
        %vm1034 = vcmp.ne.s32.totalorder %v1002, 0
        %vm1035 = vcmp.ne.s32.totalorder %v1003, 0
        %vm1036 = vcmp.ne.s32.totalorder %v1004, 0
        %vm1037 = vcmp.ne.s32.totalorder %v1005, 0
        %vm1038 = vcmp.ne.s32.totalorder %v1006, 0
        %vm1039 = vcmp.ne.s32.totalorder %v1007, 0
        %vm1040 = vcmp.ne.s32.totalorder %v1008, 0
        %vm1041 = vcmp.ne.s32.totalorder %v1009, 0
        %vm1042 = vcmp.ne.s32.totalorder %v1010, 0
        %vm1043 = vcmp.ne.s32.totalorder %v1011, 0
        %vm1044 = vcmp.ne.s32.totalorder %v1012, 0
        %vm1045 = vcmp.ne.s32.totalorder %v1013, 0
        %vm1046 = vcmp.ne.s32.totalorder %v1014, 0
        %vm1047 = vcmp.ne.s32.totalorder %v1015, 0
        %vm1048 = vcmp.ne.s32.totalorder %v1016, 0
        %vm1049 = vcmp.ne.s32.totalorder %v1017, 0
        %vm1050 = vcmp.ne.s32.totalorder %v1018, 0
        %vm1051 = vcmp.ne.s32.totalorder %v1019, 0
        %vm1052 = vcmp.ne.s32.totalorder %v1020, 0
        %vm1053 = vcmp.ne.s32.totalorder %v1021, 0
        %vm1054 = vcmp.ne.s32.totalorder %v1022, 0
        %vm1055 = vcmp.ne.s32.totalorder %v1023, 0
        %v1056 = vsel %vm1024, -1e+30, %v776
        %v1057 = vsel %vm1025, -1e+30, %v777
        %v1058 = vsel %vm1026, -1e+30, %v778
        %v1059 = vsel %vm1027, -1e+30, %v779
        %v1060 = vsel %vm1028, -1e+30, %v780
        %v1061 = vsel %vm1029, -1e+30, %v781
        %v1062 = vsel %vm1030, -1e+30, %v782
        %v1063 = vsel %vm1031, -1e+30, %v783
        %v1064 = vsel %vm1032, -1e+30, %v784
        %v1065 = vsel %vm1033, -1e+30, %v785
        %v1066 = vsel %vm1034, -1e+30, %v786
        %v1067 = vsel %vm1035, -1e+30, %v787
        %v1068 = vsel %vm1036, -1e+30, %v788
        %v1069 = vsel %vm1037, -1e+30, %v789
        %v1070 = vsel %vm1038, -1e+30, %v790
        %v1071 = vsel %vm1039, -1e+30, %v791
        %v1072 = vsel %vm1040, -1e+30, %v792
        %v1073 = vsel %vm1041, -1e+30, %v793
        %v1074 = vsel %vm1042, -1e+30, %v794
        %v1075 = vsel %vm1043, -1e+30, %v795
        %v1076 = vsel %vm1044, -1e+30, %v796
        %v1077 = vsel %vm1045, -1e+30, %v797
        %v1078 = vsel %vm1046, -1e+30, %v798
        %v1079 = vsel %vm1047, -1e+30, %v799
        %v1080 = vsel %vm1048, -1e+30, %v800
        %v1081 = vsel %vm1049, -1e+30, %v801
        %v1082 = vsel %vm1050, -1e+30, %v802
        %v1083 = vsel %vm1051, -1e+30, %v803
        %v1084 = vsel %vm1052, -1e+30, %v804
        %v1085 = vsel %vm1053, -1e+30, %v805
        %v1086 = vsel %vm1054, -1e+30, %v806
        %v1087 = vsel %vm1055, -1e+30, %v807
        %1088 = vmax.xlane.f32.xlu0 %v1056
        %v1089 = vpop.xlane.xlu0 %1088
        %1090 = vmax.xlane.f32.xlu0 %v1057
        %v1091 = vpop.xlane.xlu0 %1090
        %1092 = vmax.xlane.f32.xlu0 %v1058
        %v1093 = vpop.xlane.xlu0 %1092
        %1094 = vmax.xlane.f32.xlu0 %v1059
        %v1095 = vpop.xlane.xlu0 %1094
        %1096 = vmax.xlane.f32.xlu0 %v1060
        %v1097 = vpop.xlane.xlu0 %1096
        %1098 = vmax.xlane.f32.xlu0 %v1061
        %v1099 = vpop.xlane.xlu0 %1098
        %1100 = vmax.xlane.f32.xlu0 %v1062
        %v1101 = vpop.xlane.xlu0 %1100
        %1102 = vmax.xlane.f32.xlu0 %v1063
        %v1103 = vpop.xlane.xlu0 %1102
        %1104 = vmax.xlane.f32.xlu0 %v1064
        %v1105 = vpop.xlane.xlu0 %1104
        %1106 = vmax.xlane.f32.xlu0 %v1065
        %v1107 = vpop.xlane.xlu0 %1106
        %1108 = vmax.xlane.f32.xlu0 %v1066
        %v1109 = vpop.xlane.xlu0 %1108
        %1110 = vmax.xlane.f32.xlu0 %v1067
        %v1111 = vpop.xlane.xlu0 %1110
        %1112 = vmax.xlane.f32.xlu0 %v1068
        %v1113 = vpop.xlane.xlu0 %1112
        %1114 = vmax.xlane.f32.xlu0 %v1069
        %v1115 = vpop.xlane.xlu0 %1114
        %1116 = vmax.xlane.f32.xlu0 %v1070
        %v1117 = vpop.xlane.xlu0 %1116
        %1118 = vmax.xlane.f32.xlu0 %v1071
        %v1119 = vpop.xlane.xlu0 %1118
        %1120 = vmax.xlane.f32.xlu0 %v1072
        %v1121 = vpop.xlane.xlu0 %1120
        %1122 = vmax.xlane.f32.xlu0 %v1073
        %v1123 = vpop.xlane.xlu0 %1122
        %1124 = vmax.xlane.f32.xlu0 %v1074
        %v1125 = vpop.xlane.xlu0 %1124
        %1126 = vmax.xlane.f32.xlu0 %v1075
        %v1127 = vpop.xlane.xlu0 %1126
        %1128 = vmax.xlane.f32.xlu0 %v1076
        %v1129 = vpop.xlane.xlu0 %1128
        %1130 = vmax.xlane.f32.xlu0 %v1077
        %v1131 = vpop.xlane.xlu0 %1130
        %1132 = vmax.xlane.f32.xlu0 %v1078
        %v1133 = vpop.xlane.xlu0 %1132
        %1134 = vmax.xlane.f32.xlu0 %v1079
        %v1135 = vpop.xlane.xlu0 %1134
        %1136 = vmax.xlane.f32.xlu0 %v1080
        %v1137 = vpop.xlane.xlu0 %1136
        %1138 = vmax.xlane.f32.xlu0 %v1081
        %v1139 = vpop.xlane.xlu0 %1138
        %1140 = vmax.xlane.f32.xlu0 %v1082
        %v1141 = vpop.xlane.xlu0 %1140
        %1142 = vmax.xlane.f32.xlu0 %v1083
        %v1143 = vpop.xlane.xlu0 %1142
        %1144 = vmax.xlane.f32.xlu0 %v1084
        %v1145 = vpop.xlane.xlu0 %1144
        %1146 = vmax.xlane.f32.xlu0 %v1085
        %v1147 = vpop.xlane.xlu0 %1146
        %1148 = vmax.xlane.f32.xlu0 %v1086
        %v1149 = vpop.xlane.xlu0 %1148
        %1150 = vmax.xlane.f32.xlu0 %v1087
        %v1151 = vpop.xlane.xlu0 %1150
        %v1152 = vsub.f32 %v1056, %v1089
        %v1153 = vsub.f32 %v1057, %v1091
        %v1154 = vsub.f32 %v1058, %v1093
        %v1155 = vsub.f32 %v1059, %v1095
        %v1156 = vsub.f32 %v1060, %v1097
        %v1157 = vsub.f32 %v1061, %v1099
        %v1158 = vsub.f32 %v1062, %v1101
        %v1159 = vsub.f32 %v1063, %v1103
        %v1160 = vsub.f32 %v1064, %v1105
        %v1161 = vsub.f32 %v1065, %v1107
        %v1162 = vsub.f32 %v1066, %v1109
        %v1163 = vsub.f32 %v1067, %v1111
        %v1164 = vsub.f32 %v1068, %v1113
        %v1165 = vsub.f32 %v1069, %v1115
        %v1166 = vsub.f32 %v1070, %v1117
        %v1167 = vsub.f32 %v1071, %v1119
        %v1168 = vsub.f32 %v1072, %v1121
        %v1169 = vsub.f32 %v1073, %v1123
        %v1170 = vsub.f32 %v1074, %v1125
        %v1171 = vsub.f32 %v1075, %v1127
        %v1172 = vsub.f32 %v1076, %v1129
        %v1173 = vsub.f32 %v1077, %v1131
        %v1174 = vsub.f32 %v1078, %v1133
        %v1175 = vsub.f32 %v1079, %v1135
        %v1176 = vsub.f32 %v1080, %v1137
        %v1177 = vsub.f32 %v1081, %v1139
        %v1178 = vsub.f32 %v1082, %v1141
        %v1179 = vsub.f32 %v1083, %v1143
        %v1180 = vsub.f32 %v1084, %v1145
        %v1181 = vsub.f32 %v1085, %v1147
        %v1182 = vsub.f32 %v1086, %v1149
        %v1183 = vsub.f32 %v1087, %v1151
        %v1184 = vmul.f32 %v1152, 1.442695
        %v1185 = vpow.pop %v1184
        %v1186 = vmul.f32 %v1153, 1.442695
        %v1187 = vpow.pop %v1186
        %v1188 = vmul.f32 %v1154, 1.442695
        %v1189 = vpow.pop %v1188
        %v1190 = vmul.f32 %v1155, 1.442695
        %v1191 = vpow.pop %v1190
        %v1192 = vmul.f32 %v1156, 1.442695
        %v1193 = vpow.pop %v1192
        %v1194 = vmul.f32 %v1157, 1.442695
        %v1195 = vpow.pop %v1194
        %v1196 = vmul.f32 %v1158, 1.442695
        %v1197 = vpow.pop %v1196
        %v1198 = vmul.f32 %v1159, 1.442695
        %v1199 = vpow.pop %v1198
        %v1200 = vmul.f32 %v1160, 1.442695
        %v1201 = vpow.pop %v1200
        %v1202 = vmul.f32 %v1161, 1.442695
        %v1203 = vpow.pop %v1202
        %v1204 = vmul.f32 %v1162, 1.442695
        %v1205 = vpow.pop %v1204
        %v1206 = vmul.f32 %v1163, 1.442695
        %v1207 = vpow.pop %v1206
        %v1208 = vmul.f32 %v1164, 1.442695
        %v1209 = vpow.pop %v1208
        %v1210 = vmul.f32 %v1165, 1.442695
        %v1211 = vpow.pop %v1210
        %v1212 = vmul.f32 %v1166, 1.442695
        %v1213 = vpow.pop %v1212
        %v1214 = vmul.f32 %v1167, 1.442695
        %v1215 = vpow.pop %v1214
        %v1216 = vmul.f32 %v1168, 1.442695
        %v1217 = vpow.pop %v1216
        %v1218 = vmul.f32 %v1169, 1.442695
        %v1219 = vpow.pop %v1218
        %v1220 = vmul.f32 %v1170, 1.442695
        %v1221 = vpow.pop %v1220
        %v1222 = vmul.f32 %v1171, 1.442695
        %v1223 = vpow.pop %v1222
        %v1224 = vmul.f32 %v1172, 1.442695
        %v1225 = vpow.pop %v1224
        %v1226 = vmul.f32 %v1173, 1.442695
        %v1227 = vpow.pop %v1226
        %v1228 = vmul.f32 %v1174, 1.442695
        %v1229 = vpow.pop %v1228
        %v1230 = vmul.f32 %v1175, 1.442695
        %v1231 = vpow.pop %v1230
        %v1232 = vmul.f32 %v1176, 1.442695
        %v1233 = vpow.pop %v1232
        %v1234 = vmul.f32 %v1177, 1.442695
        %v1235 = vpow.pop %v1234
        %v1236 = vmul.f32 %v1178, 1.442695
        %v1237 = vpow.pop %v1236
        %v1238 = vmul.f32 %v1179, 1.442695
        %v1239 = vpow.pop %v1238
        %v1240 = vmul.f32 %v1180, 1.442695
        %v1241 = vpow.pop %v1240
        %v1242 = vmul.f32 %v1181, 1.442695
        %v1243 = vpow.pop %v1242
        %v1244 = vmul.f32 %v1182, 1.442695
        %v1245 = vpow.pop %v1244
        %v1246 = vmul.f32 %v1183, 1.442695
        %v1247 = vpow.pop %v1246
        %1248 = vadd.xlane.f32.xlu0 %v1185
        %v1249 = vpop.xlane.xlu0 %1248
        %1250 = vadd.xlane.f32.xlu0 %v1187
        %v1251 = vpop.xlane.xlu0 %1250
        %1252 = vadd.xlane.f32.xlu0 %v1189
        %v1253 = vpop.xlane.xlu0 %1252
        %1254 = vadd.xlane.f32.xlu0 %v1191
        %v1255 = vpop.xlane.xlu0 %1254
        %1256 = vadd.xlane.f32.xlu0 %v1193
        %v1257 = vpop.xlane.xlu0 %1256
        %1258 = vadd.xlane.f32.xlu0 %v1195
        %v1259 = vpop.xlane.xlu0 %1258
        %1260 = vadd.xlane.f32.xlu0 %v1197
        %v1261 = vpop.xlane.xlu0 %1260
        %1262 = vadd.xlane.f32.xlu0 %v1199
        %v1263 = vpop.xlane.xlu0 %1262
        %1264 = vadd.xlane.f32.xlu0 %v1201
        %v1265 = vpop.xlane.xlu0 %1264
        %1266 = vadd.xlane.f32.xlu0 %v1203
        %v1267 = vpop.xlane.xlu0 %1266
        %1268 = vadd.xlane.f32.xlu0 %v1205
        %v1269 = vpop.xlane.xlu0 %1268
        %1270 = vadd.xlane.f32.xlu0 %v1207
        %v1271 = vpop.xlane.xlu0 %1270
        %1272 = vadd.xlane.f32.xlu0 %v1209
        %v1273 = vpop.xlane.xlu0 %1272
        %1274 = vadd.xlane.f32.xlu0 %v1211
        %v1275 = vpop.xlane.xlu0 %1274
        %1276 = vadd.xlane.f32.xlu0 %v1213
        %v1277 = vpop.xlane.xlu0 %1276
        %1278 = vadd.xlane.f32.xlu0 %v1215
        %v1279 = vpop.xlane.xlu0 %1278
        %1280 = vadd.xlane.f32.xlu0 %v1217
        %v1281 = vpop.xlane.xlu0 %1280
        %1282 = vadd.xlane.f32.xlu0 %v1219
        %v1283 = vpop.xlane.xlu0 %1282
        %1284 = vadd.xlane.f32.xlu0 %v1221
        %v1285 = vpop.xlane.xlu0 %1284
        %1286 = vadd.xlane.f32.xlu0 %v1223
        %v1287 = vpop.xlane.xlu0 %1286
        %1288 = vadd.xlane.f32.xlu0 %v1225
        %v1289 = vpop.xlane.xlu0 %1288
        %1290 = vadd.xlane.f32.xlu0 %v1227
        %v1291 = vpop.xlane.xlu0 %1290
        %1292 = vadd.xlane.f32.xlu0 %v1229
        %v1293 = vpop.xlane.xlu0 %1292
        %1294 = vadd.xlane.f32.xlu0 %v1231
        %v1295 = vpop.xlane.xlu0 %1294
        %1296 = vadd.xlane.f32.xlu0 %v1233
        %v1297 = vpop.xlane.xlu0 %1296
        %1298 = vadd.xlane.f32.xlu0 %v1235
        %v1299 = vpop.xlane.xlu0 %1298
        %1300 = vadd.xlane.f32.xlu0 %v1237
        %v1301 = vpop.xlane.xlu0 %1300
        %1302 = vadd.xlane.f32.xlu0 %v1239
        %v1303 = vpop.xlane.xlu0 %1302
        %1304 = vadd.xlane.f32.xlu0 %v1241
        %v1305 = vpop.xlane.xlu0 %1304
        %1306 = vadd.xlane.f32.xlu0 %v1243
        %v1307 = vpop.xlane.xlu0 %1306
        %1308 = vadd.xlane.f32.xlu0 %v1245
        %v1309 = vpop.xlane.xlu0 %1308
        %1310 = vadd.xlane.f32.xlu0 %v1247
        %v1311 = vpop.xlane.xlu0 %1310
        %v1312 = vrcp.pop %v1249
        %v1313 = vrcp.pop %v1251
        %v1314 = vrcp.pop %v1253
        %v1315 = vrcp.pop %v1255
        %v1316 = vrcp.pop %v1257
        %v1317 = vrcp.pop %v1259
        %v1318 = vrcp.pop %v1261
        %v1319 = vrcp.pop %v1263
        %v1320 = vrcp.pop %v1265
        %v1321 = vrcp.pop %v1267
        %v1322 = vrcp.pop %v1269
        %v1323 = vrcp.pop %v1271
        %v1324 = vrcp.pop %v1273
        %v1325 = vrcp.pop %v1275
        %v1326 = vrcp.pop %v1277
        %v1327 = vrcp.pop %v1279
        %v1328 = vrcp.pop %v1281
        %v1329 = vrcp.pop %v1283
        %v1330 = vrcp.pop %v1285
        %v1331 = vrcp.pop %v1287
        %v1332 = vrcp.pop %v1289
        %v1333 = vrcp.pop %v1291
        %v1334 = vrcp.pop %v1293
        %v1335 = vrcp.pop %v1295
        %v1336 = vrcp.pop %v1297
        %v1337 = vrcp.pop %v1299
        %v1338 = vrcp.pop %v1301
        %v1339 = vrcp.pop %v1303
        %v1340 = vrcp.pop %v1305
        %v1341 = vrcp.pop %v1307
        %v1342 = vrcp.pop %v1309
        %v1343 = vrcp.pop %v1311
        %v1344 = vmul.f32 %v1185, %v1312
        %v1345 = vmul.f32 %v1187, %v1313
        %v1346 = vmul.f32 %v1189, %v1314
        %v1347 = vmul.f32 %v1191, %v1315
        %v1348 = vmul.f32 %v1193, %v1316
        %v1349 = vmul.f32 %v1195, %v1317
        %v1350 = vmul.f32 %v1197, %v1318
        %v1351 = vmul.f32 %v1199, %v1319
        %v1352 = vmul.f32 %v1201, %v1320
        %v1353 = vmul.f32 %v1203, %v1321
        %v1354 = vmul.f32 %v1205, %v1322
        %v1355 = vmul.f32 %v1207, %v1323
        %v1356 = vmul.f32 %v1209, %v1324
        %v1357 = vmul.f32 %v1211, %v1325
        %v1358 = vmul.f32 %v1213, %v1326
        %v1359 = vmul.f32 %v1215, %v1327
        %v1360 = vmul.f32 %v1217, %v1328
        %v1361 = vmul.f32 %v1219, %v1329
        %v1362 = vmul.f32 %v1221, %v1330
        %v1363 = vmul.f32 %v1223, %v1331
        %v1364 = vmul.f32 %v1225, %v1332
        %v1365 = vmul.f32 %v1227, %v1333
        %v1366 = vmul.f32 %v1229, %v1334
        %v1367 = vmul.f32 %v1231, %v1335
        %v1368 = vmul.f32 %v1233, %v1336
        %v1369 = vmul.f32 %v1235, %v1337
        %v1370 = vmul.f32 %v1237, %v1338
        %v1371 = vmul.f32 %v1239, %v1339
        %v1372 = vmul.f32 %v1241, %v1340
        %v1373 = vmul.f32 %v1243, %v1341
        %v1374 = vmul.f32 %v1245, %v1342
        %v1375 = vmul.f32 %v1247, %v1343
        %1376 = vst [vmem:[%s291] sm:$0xff] %v1344
        %1377 = vst [vmem:[%s291 + $0x8] sm:$0xff] %v1345
        %1378 = vst [vmem:[%s291 + $0x10] sm:$0xff] %v1346
        %1379 = vst [vmem:[%s291 + $0x18] sm:$0xff] %v1347
        %1380 = vst [vmem:[%s291 + $0x20] sm:$0xff] %v1348
        %1381 = vst [vmem:[%s291 + $0x28] sm:$0xff] %v1349
        %1382 = vst [vmem:[%s291 + $0x30] sm:$0xff] %v1350
        %1383 = vst [vmem:[%s291 + $0x38] sm:$0xff] %v1351
        %1384 = vst [vmem:[%s291 + $0x40] sm:$0xff] %v1352
        %1385 = vst [vmem:[%s291 + $0x48] sm:$0xff] %v1353
        %1386 = vst [vmem:[%s291 + $0x50] sm:$0xff] %v1354
        %1387 = vst [vmem:[%s291 + $0x58] sm:$0xff] %v1355
        %1388 = vst [vmem:[%s291 + $0x60] sm:$0xff] %v1356
        %1389 = vst [vmem:[%s291 + $0x68] sm:$0xff] %v1357
        %1390 = vst [vmem:[%s291 + $0x70] sm:$0xff] %v1358
        %1391 = vst [vmem:[%s291 + $0x78] sm:$0xff] %v1359
        %1392 = vst [vmem:[%s291 + $0x80] sm:$0xff] %v1360
        %1393 = vst [vmem:[%s291 + $0x88] sm:$0xff] %v1361
        %1394 = vst [vmem:[%s291 + $0x90] sm:$0xff] %v1362
        %1395 = vst [vmem:[%s291 + $0x98] sm:$0xff] %v1363
        %1396 = vst [vmem:[%s291 + $0xa0] sm:$0xff] %v1364
        %1397 = vst [vmem:[%s291 + $0xa8] sm:$0xff] %v1365
        %1398 = vst [vmem:[%s291 + $0xb0] sm:$0xff] %v1366
        %1399 = vst [vmem:[%s291 + $0xb8] sm:$0xff] %v1367
        %1400 = vst [vmem:[%s291 + $0xc0] sm:$0xff] %v1368
        %1401 = vst [vmem:[%s291 + $0xc8] sm:$0xff] %v1369
        %1402 = vst [vmem:[%s291 + $0xd0] sm:$0xff] %v1370
        %1403 = vst [vmem:[%s291 + $0xd8] sm:$0xff] %v1371
        %1404 = vst [vmem:[%s291 + $0xe0] sm:$0xff] %v1372
        %1405 = vst [vmem:[%s291 + $0xe8] sm:$0xff] %v1373
        %1406 = vst [vmem:[%s291 + $0xf0] sm:$0xff] %v1374
        %1407 = vst [vmem:[%s291 + $0xf8] sm:$0xff] %v1375
        %1408 = vmatprep.subr.mxu0 0.0
        %1409 = vmatpush1.msra.mxu0 %v390
        %1410 = vmatprep.subr.mxu0 0.0
        %1411 = vmatpush1.msra.mxu0 %v391
        %1412 = vmatprep.subr.mxu0 0.0
        %1413 = vmatpush1.msra.mxu0 %v392
        %1414 = vmatprep.subr.mxu0 0.0
        %1415 = vmatpush1.msra.mxu0 %v393
        %1416 = vmatprep.subr.mxu0 0.0
        %1417 = vmatpush1.msra.mxu0 %v394
        %1418 = vmatprep.subr.mxu0 0.0
        %1419 = vmatpush1.msra.mxu0 %v395
        %1420 = vmatprep.subr.mxu0 0.0
        %1421 = vmatpush1.msra.mxu0 %v396
        %1422 = vmatprep.subr.mxu0 0.0
        %1423 = vmatpush1.msra.mxu0 %v397
        %1424 = vmatprep.subr.mxu0 0.0
        %1425 = vmatpush1.msra.mxu0 %v398
        %1426 = vmatprep.subr.mxu0 0.0
        %1427 = vmatpush1.msra.mxu0 %v399
        %1428 = vmatprep.subr.mxu0 0.0
        %1429 = vmatpush1.msra.mxu0 %v400
        %1430 = vmatprep.subr.mxu0 0.0
        %1431 = vmatpush1.msra.mxu0 %v401
        %1432 = vmatprep.subr.mxu0 0.0
        %1433 = vmatpush1.msra.mxu0 %v402
        %1434 = vmatprep.subr.mxu0 0.0
        %1435 = vmatpush1.msra.mxu0 %v403
        %1436 = vmatprep.subr.mxu0 0.0
        %1437 = vmatpush1.msra.mxu0 %v404
        %1438 = vmatprep.subr.mxu0 0.0
        %1439 = vmatpush1.msra.mxu0 %v405
        %1440 = vmatprep.subr.mxu0 0.0
        %1441 = vmatpush1.msra.mxu0 0.0
        %1442 = vmatprep.subr.mxu0 0.0
        %1443 = vmatpush1.msra.mxu0 0.0
        %1444 = vmatprep.subr.mxu0 0.0
        %1445 = vmatpush1.msra.mxu0 0.0
        %1446 = vmatprep.subr.mxu0 0.0
        %1447 = vmatpush1.msra.mxu0 0.0
        %1448 = vmatprep.subr.mxu0 0.0
        %1449 = vmatpush1.msra.mxu0 0.0
        %1450 = vmatprep.subr.mxu0 0.0
        %1451 = vmatpush1.msra.mxu0 0.0
        %1452 = vmatprep.subr.mxu0 0.0
        %1453 = vmatpush1.msra.mxu0 0.0
        %1454 = vmatprep.subr.mxu0 0.0
        %1455 = vmatpush1.msra.mxu0 0.0
        %1456 = vmatprep.subr.mxu0 0.0
        %1457 = vmatpush1.msra.mxu0 0.0
        %1458 = vmatprep.subr.mxu0 0.0
        %1459 = vmatpush1.msra.mxu0 0.0
        %1460 = vmatprep.subr.mxu0 0.0
        %1461 = vmatpush1.msra.mxu0 0.0
        %1462 = vmatprep.subr.mxu0 0.0
        %1463 = vmatpush1.msra.mxu0 0.0
        %1464 = vmatprep.subr.mxu0 0.0
        %1465 = vmatpush1.msra.mxu0 0.0
        %1466 = vmatprep.subr.mxu0 0.0
        %1467 = vmatpush1.msra.mxu0 0.0
        %1468 = vmatprep.subr.mxu0 0.0
        %1469 = vmatpush1.msra.mxu0 0.0
        %1470 = vmatprep.subr.mxu0 0.0
        %1471 = vmatpush1.msra.mxu0 0.0
        %1472 = vmatprep.mubr.f32.mxu0 0.0
        %1473 = vmatmul.mubr.f32.gmra.mrb[0].mxu0 %v1344
        %v1474 = vpop.f32.mrb[0].mxu0
        %v1475 = vadd.f32 0.0, %v1474
        %v1476 = vpop.f32.mrb[0].mxu0
        %1477 = vmatprep.mubr.f32.mxu0 0.0
        %1478 = vmatmul.mubr.f32.gmra.mrb[0].mxu0 %v1345
        %v1479 = vpop.f32.mrb[0].mxu0
        %v1480 = vadd.f32 0.0, %v1479
        %v1481 = vpop.f32.mrb[0].mxu0
        %1482 = vmatprep.mubr.f32.mxu0 0.0
        %1483 = vmatmul.mubr.f32.gmra.mrb[0].mxu0 %v1346
        %v1484 = vpop.f32.mrb[0].mxu0
        %v1485 = vadd.f32 0.0, %v1484
        %v1486 = vpop.f32.mrb[0].mxu0
        %1487 = vmatprep.mubr.f32.mxu0 0.0
        %1488 = vmatmul.mubr.f32.gmra.mrb[0].mxu0 %v1347
        %v1489 = vpop.f32.mrb[0].mxu0
        %v1490 = vadd.f32 0.0, %v1489
        %v1491 = vpop.f32.mrb[0].mxu0
        %1492 = vmatprep.mubr.f32.mxu0 0.0
        %1493 = vmatmul.mubr.f32.gmra.mrb[0].mxu0 %v1348
        %v1494 = vpop.f32.mrb[0].mxu0
        %v1495 = vadd.f32 0.0, %v1494
        %v1496 = vpop.f32.mrb[0].mxu0
        %1497 = vmatprep.mubr.f32.mxu0 0.0
        %1498 = vmatmul.mubr.f32.gmra.mrb[0].mxu0 %v1349
        %v1499 = vpop.f32.mrb[0].mxu0
        %v1500 = vadd.f32 0.0, %v1499
        %v1501 = vpop.f32.mrb[0].mxu0
        %1502 = vmatprep.mubr.f32.mxu0 0.0
        %1503 = vmatmul.mubr.f32.gmra.mrb[0].mxu0 %v1350
        %v1504 = vpop.f32.mrb[0].mxu0
        %v1505 = vadd.f32 0.0, %v1504
        %v1506 = vpop.f32.mrb[0].mxu0
        %1507 = vmatprep.mubr.f32.mxu0 0.0
        %1508 = vmatmul.mubr.f32.gmra.mrb[0].mxu0 %v1351
        %v1509 = vpop.f32.mrb[0].mxu0
        %v1510 = vadd.f32 0.0, %v1509
        %v1511 = vpop.f32.mrb[0].mxu0
        %1512 = vmatprep.mubr.f32.mxu0 0.0
        %1513 = vmatmul.mubr.f32.gmra.mrb[0].mxu0 %v1352
        %v1514 = vpop.f32.mrb[0].mxu0
        %v1515 = vadd.f32 0.0, %v1514
        %v1516 = vpop.f32.mrb[0].mxu0
        %1517 = vmatprep.mubr.f32.mxu0 0.0
        %1518 = vmatmul.mubr.f32.gmra.mrb[0].mxu0 %v1353
        %v1519 = vpop.f32.mrb[0].mxu0
        %v1520 = vadd.f32 0.0, %v1519
        %v1521 = vpop.f32.mrb[0].mxu0
        %1522 = vmatprep.mubr.f32.mxu0 0.0
        %1523 = vmatmul.mubr.f32.gmra.mrb[0].mxu0 %v1354
        %v1524 = vpop.f32.mrb[0].mxu0
        %v1525 = vadd.f32 0.0, %v1524
        %v1526 = vpop.f32.mrb[0].mxu0
        %1527 = vmatprep.mubr.f32.mxu0 0.0
        %1528 = vmatmul.mubr.f32.gmra.mrb[0].mxu0 %v1355
        %v1529 = vpop.f32.mrb[0].mxu0
        %v1530 = vadd.f32 0.0, %v1529
        %v1531 = vpop.f32.mrb[0].mxu0
        %1532 = vmatprep.mubr.f32.mxu0 0.0
        %1533 = vmatmul.mubr.f32.gmra.mrb[0].mxu0 %v1356
        %v1534 = vpop.f32.mrb[0].mxu0
        %v1535 = vadd.f32 0.0, %v1534
        %v1536 = vpop.f32.mrb[0].mxu0
        %1537 = vmatprep.mubr.f32.mxu0 0.0
        %1538 = vmatmul.mubr.f32.gmra.mrb[0].mxu0 %v1357
        %v1539 = vpop.f32.mrb[0].mxu0
        %v1540 = vadd.f32 0.0, %v1539
        %v1541 = vpop.f32.mrb[0].mxu0
        %1542 = vmatprep.mubr.f32.mxu0 0.0
        %1543 = vmatmul.mubr.f32.gmra.mrb[0].mxu0 %v1358
        %v1544 = vpop.f32.mrb[0].mxu0
        %v1545 = vadd.f32 0.0, %v1544
        %v1546 = vpop.f32.mrb[0].mxu0
        %1547 = vmatprep.mubr.f32.mxu0 0.0
        %1548 = vmatmul.mubr.f32.gmra.mrb[0].mxu0 %v1359
        %v1549 = vpop.f32.mrb[0].mxu0
        %v1550 = vadd.f32 0.0, %v1549
        %v1551 = vpop.f32.mrb[0].mxu0
        %1552 = vmatprep.mubr.f32.mxu0 0.0
        %1553 = vmatmul.mubr.f32.gmra.mrb[0].mxu0 %v1360
        %v1554 = vpop.f32.mrb[0].mxu0
        %v1555 = vadd.f32 0.0, %v1554
        %v1556 = vpop.f32.mrb[0].mxu0
        %1557 = vmatprep.mubr.f32.mxu0 0.0
        %1558 = vmatmul.mubr.f32.gmra.mrb[0].mxu0 %v1361
        %v1559 = vpop.f32.mrb[0].mxu0
        %v1560 = vadd.f32 0.0, %v1559
        %v1561 = vpop.f32.mrb[0].mxu0
        %1562 = vmatprep.mubr.f32.mxu0 0.0
        %1563 = vmatmul.mubr.f32.gmra.mrb[0].mxu0 %v1362
        %v1564 = vpop.f32.mrb[0].mxu0
        %v1565 = vadd.f32 0.0, %v1564
        %v1566 = vpop.f32.mrb[0].mxu0
        %1567 = vmatprep.mubr.f32.mxu0 0.0
        %1568 = vmatmul.mubr.f32.gmra.mrb[0].mxu0 %v1363
        %v1569 = vpop.f32.mrb[0].mxu0
        %v1570 = vadd.f32 0.0, %v1569
        %v1571 = vpop.f32.mrb[0].mxu0
        %1572 = vmatprep.mubr.f32.mxu0 0.0
        %1573 = vmatmul.mubr.f32.gmra.mrb[0].mxu0 %v1364
        %v1574 = vpop.f32.mrb[0].mxu0
        %v1575 = vadd.f32 0.0, %v1574
        %v1576 = vpop.f32.mrb[0].mxu0
        %1577 = vmatprep.mubr.f32.mxu0 0.0
        %1578 = vmatmul.mubr.f32.gmra.mrb[0].mxu0 %v1365
        %v1579 = vpop.f32.mrb[0].mxu0
        %v1580 = vadd.f32 0.0, %v1579
        %v1581 = vpop.f32.mrb[0].mxu0
        %1582 = vmatprep.mubr.f32.mxu0 0.0
        %1583 = vmatmul.mubr.f32.gmra.mrb[0].mxu0 %v1366
        %v1584 = vpop.f32.mrb[0].mxu0
        %v1585 = vadd.f32 0.0, %v1584
        %v1586 = vpop.f32.mrb[0].mxu0
        %1587 = vmatprep.mubr.f32.mxu0 0.0
        %1588 = vmatmul.mubr.f32.gmra.mrb[0].mxu0 %v1367
        %v1589 = vpop.f32.mrb[0].mxu0
        %v1590 = vadd.f32 0.0, %v1589
        %v1591 = vpop.f32.mrb[0].mxu0
        %1592 = vmatprep.mubr.f32.mxu0 0.0
        %1593 = vmatmul.mubr.f32.gmra.mrb[0].mxu0 %v1368
        %v1594 = vpop.f32.mrb[0].mxu0
        %v1595 = vadd.f32 0.0, %v1594
        %v1596 = vpop.f32.mrb[0].mxu0
        %1597 = vmatprep.mubr.f32.mxu0 0.0
        %1598 = vmatmul.mubr.f32.gmra.mrb[0].mxu0 %v1369
        %v1599 = vpop.f32.mrb[0].mxu0
        %v1600 = vadd.f32 0.0, %v1599
        %v1601 = vpop.f32.mrb[0].mxu0
        %1602 = vmatprep.mubr.f32.mxu0 0.0
        %1603 = vmatmul.mubr.f32.gmra.mrb[0].mxu0 %v1370
        %v1604 = vpop.f32.mrb[0].mxu0
        %v1605 = vadd.f32 0.0, %v1604
        %v1606 = vpop.f32.mrb[0].mxu0
        %1607 = vmatprep.mubr.f32.mxu0 0.0
        %1608 = vmatmul.mubr.f32.gmra.mrb[0].mxu0 %v1371
        %v1609 = vpop.f32.mrb[0].mxu0
        %v1610 = vadd.f32 0.0, %v1609
        %v1611 = vpop.f32.mrb[0].mxu0
        %1612 = vmatprep.mubr.f32.mxu0 0.0
        %1613 = vmatmul.mubr.f32.gmra.mrb[0].mxu0 %v1372
        %v1614 = vpop.f32.mrb[0].mxu0
        %v1615 = vadd.f32 0.0, %v1614
        %v1616 = vpop.f32.mrb[0].mxu0
        %1617 = vmatprep.mubr.f32.mxu0 0.0
        %1618 = vmatmul.mubr.f32.gmra.mrb[0].mxu0 %v1373
        %v1619 = vpop.f32.mrb[0].mxu0
        %v1620 = vadd.f32 0.0, %v1619
        %v1621 = vpop.f32.mrb[0].mxu0
        %1622 = vmatprep.mubr.f32.mxu0 0.0
        %1623 = vmatmul.mubr.f32.gmra.mrb[0].mxu0 %v1374
        %v1624 = vpop.f32.mrb[0].mxu0
        %v1625 = vadd.f32 0.0, %v1624
        %v1626 = vpop.f32.mrb[0].mxu0
        %1627 = vmatprep.mubr.f32.mxu0 0.0
        %1628 = vmatmul.mubr.f32.gmra.mrb[0].mxu0 %v1375
        %v1629 = vpop.f32.mrb[0].mxu0
        %v1630 = vadd.f32 0.0, %v1629
        %v1631 = vpop.f32.mrb[0].mxu0
        %1632 = vdwg.mxu0
        %1633 = vst.msk [vmem:[%s338] sm:$0xff] %vm406, %v1475
        %1634 = vst.msk [vmem:[%s338 + $0x8] sm:$0xff] %vm406, %v1480
        %1635 = vst.msk [vmem:[%s338 + $0x10] sm:$0xff] %vm406, %v1485
        %1636 = vst.msk [vmem:[%s338 + $0x18] sm:$0xff] %vm406, %v1490
        %1637 = vst.msk [vmem:[%s338 + $0x20] sm:$0xff] %vm406, %v1495
        %1638 = vst.msk [vmem:[%s338 + $0x28] sm:$0xff] %vm406, %v1500
        %1639 = vst.msk [vmem:[%s338 + $0x30] sm:$0xff] %vm406, %v1505
        %1640 = vst.msk [vmem:[%s338 + $0x38] sm:$0xff] %vm406, %v1510
        %1641 = vst.msk [vmem:[%s338 + $0x40] sm:$0xff] %vm406, %v1515
        %1642 = vst.msk [vmem:[%s338 + $0x48] sm:$0xff] %vm406, %v1520
        %1643 = vst.msk [vmem:[%s338 + $0x50] sm:$0xff] %vm406, %v1525
        %1644 = vst.msk [vmem:[%s338 + $0x58] sm:$0xff] %vm406, %v1530
        %1645 = vst.msk [vmem:[%s338 + $0x60] sm:$0xff] %vm406, %v1535
        %1646 = vst.msk [vmem:[%s338 + $0x68] sm:$0xff] %vm406, %v1540
        %1647 = vst.msk [vmem:[%s338 + $0x70] sm:$0xff] %vm406, %v1545
        %1648 = vst.msk [vmem:[%s338 + $0x78] sm:$0xff] %vm406, %v1550
        %1649 = vst.msk [vmem:[%s338 + $0x80] sm:$0xff] %vm406, %v1555
        %1650 = vst.msk [vmem:[%s338 + $0x88] sm:$0xff] %vm406, %v1560
        %1651 = vst.msk [vmem:[%s338 + $0x90] sm:$0xff] %vm406, %v1565
        %1652 = vst.msk [vmem:[%s338 + $0x98] sm:$0xff] %vm406, %v1570
        %1653 = vst.msk [vmem:[%s338 + $0xa0] sm:$0xff] %vm406, %v1575
        %1654 = vst.msk [vmem:[%s338 + $0xa8] sm:$0xff] %vm406, %v1580
        %1655 = vst.msk [vmem:[%s338 + $0xb0] sm:$0xff] %vm406, %v1585
        %1656 = vst.msk [vmem:[%s338 + $0xb8] sm:$0xff] %vm406, %v1590
        %1657 = vst.msk [vmem:[%s338 + $0xc0] sm:$0xff] %vm406, %v1595
        %1658 = vst.msk [vmem:[%s338 + $0xc8] sm:$0xff] %vm406, %v1600
        %1659 = vst.msk [vmem:[%s338 + $0xd0] sm:$0xff] %vm406, %v1605
        %1660 = vst.msk [vmem:[%s338 + $0xd8] sm:$0xff] %vm406, %v1610
        %1661 = vst.msk [vmem:[%s338 + $0xe0] sm:$0xff] %vm406, %v1615
        %1662 = vst.msk [vmem:[%s338 + $0xe8] sm:$0xff] %vm406, %v1620
        %1663 = vst.msk [vmem:[%s338 + $0xf0] sm:$0xff] %vm406, %v1625
        %1664 = vst.msk [vmem:[%s338 + $0xf8] sm:$0xff] %vm406, %v1630
        %s1665 = sand.u32 %s148, 1
        %s1666 = scalar_lea.sflag [#allocation3], %s1665
        %s1667 = sand.u32 %s148, 1
        %s1668 = smul.addr %s1667, 256
        %s1669 = scalar_lea.vmem [#allocation2], %s1668
        %s1670 = smul.u32 32, %s25
        %p1671 = scmp.lt.s32.totalorder %s24, 1
        %s1672 = scalar_select %p1671, %s24, 1
        %p1673 = scmp.lt.s32.totalorder %s1670, 31
        %s1674 = scalar_select %p1673, %s1670, 31
        %s1675 = smul.addr %s1672, 32
        %s1676 = sadd.s32 %s1674, %s1675
        %s1677 = smul.addr %s1676, 8
        %s1678 = scalar_lea.vmem %s5, %s1677
        // Predicated region
        $region37: #{tpu_custom_call.1} parent=35 // pred_check
          %p1679 = pneg %p158
        $region38: #{tpu_custom_call.1} parent=35 // pred_check_branch
          %1681 = sbr.rel (%p1679) target = $region40
        $region39: #{tpu_custom_call.1} parent=35 // pred_region
          %s1682 = smul.u32 32, %s25
          %s1684 = ssub.s32 4096, 4096
          %1685 = vsyncadd %s1666, %s1684
          %s1686 = smul.addr %s24, 32
          %s1687 = sadd.s32 %s1682, %s1686
          %s1688 = smul.addr %s1687, 128
          %s1689 = scalar_lea.hbm %s4, %s1688
          %s1690 = sshll.u32 %s1669, 4
          %s1691 = int_to_ptr.vmem [resolvable:$true] %s1690
          %1696 = dma.vmem_to_hbm [thread:$0]  %s1691, 4096, %s1689, %s1666, 128, 128, 8
        $region40: #{tpu_custom_call.1} parent=35 // pred_fallthru
          _
        // Predicated region
        $region41: #{tpu_custom_call.1} parent=35 // pred_check
          %p1697 = pneg %p186
        $region42: #{tpu_custom_call.1} parent=35 // pred_check_branch
          %1699 = sbr.rel (%p1697) target = $region44
        $region43: #{tpu_custom_call.1} parent=35 // pred_region
          %s1700 = smul.u32 32, %s25
        $region44: #{tpu_custom_call.1} parent=35 // pred_fallthru
          _
      $region36: #{tpu_custom_call.1} parent=5 // pred_fallthru
        _
      %p1701 = scmp.le.s32.totalorder 2, %s15
      // Predicated region
      $region45: #{tpu_custom_call.1} parent=5 // pred_check
        %p1702 = pneg %p1701
      $region46: #{tpu_custom_call.1} parent=5 // pred_check_branch
        %1704 = sbr.rel (%p1702) target = $region48
      $region47: #{tpu_custom_call.1} parent=5 // pred_region
        %s1705 = ssub.s32 %s15, 2
        // Predicated region
        $region49: #{tpu_custom_call.1} parent=47 // pred_check
          %p1706 = pneg %p164
        $region50: #{tpu_custom_call.1} parent=47 // pred_check_branch
          %1708 = sbr.rel (%p1706) target = $region52
        $region51: #{tpu_custom_call.1} parent=47 // pred_region
          %s1709 = sand.u32 %s149, 1
          %s1710 = scalar_lea.sflag [#allocation3], %s1709
          %s1711 = sand.u32 %s149, 1
          %s1712 = smul.addr %s1711, 256
          %s1713 = scalar_lea.vmem [#allocation2], %s1712
          %1714 = dma.done %s1710, 4096
        $region52: #{tpu_custom_call.1} parent=47 // pred_fallthru
          _
        // Predicated region
        $region53: #{tpu_custom_call.1} parent=47 // pred_check
          %p1715 = pneg %p192
        $region54: #{tpu_custom_call.1} parent=47 // pred_check_branch
          %1717 = sbr.rel (%p1715) target = $region56
        $region55: #{tpu_custom_call.1} parent=47 // pred_region
          %s1718 = smul.u32 32, %s27
          %p1719 = scmp.lt.s32.totalorder %s26, 1
          %s1720 = scalar_select %p1719, %s26, 1
          %p1721 = scmp.lt.s32.totalorder %s1718, 31
          %s1722 = scalar_select %p1721, %s1718, 31
          %s1723 = smul.addr %s1720, 32
          %s1724 = sadd.s32 %s1722, %s1723
          %s1725 = smul.addr %s1724, 8
          %s1726 = scalar_lea.vmem %s5, %s1725
        $region56: #{tpu_custom_call.1} parent=47 // pred_fallthru
          _
      $region48: #{tpu_custom_call.1} parent=5 // pred_fallthru
        _
    $region6: #{tpu_custom_call.1} parent=1 // loop_footer
      %s19 = sadd.s32 1, %s15
    $region7: #{tpu_custom_call.1} parent=1 // loop_footer_branch
      %14 = sbr.rel target = $region3
    $region8: #{tpu_custom_call.1} parent=1 // loop_exit
      _
    %1727 = vsyncpa [#allocation3], 1
    %s1728 = scalar_lea.sflag [#allocation3], 1
    %1729 = vsyncpa %s1728, 1

</llo_original>
